<compile_context>
chip_gen: v5e
topology: v5e:2x2
jax: 0.10.0
libtpu: 0.0.40
codegen_flags: <defaults>
</compile_context>

<pallas_src>
import jax
import jax.numpy as jnp
from jax import lax
from jax.experimental import pallas as pl
from jax.experimental.pallas import tpu as pltpu


def _global_context_kernel(
    lctx_ref,    # (B, Tc, H)  per-chunk local-context tile, source dtype
    sbert_ref,   # (B, H)  f32
    gpast_ref,   # (B, H)  f32
    w_ref,       # (4H, Gp) bf16 slab: [W_ih^T | W_hh^T | Wt | Wt@Wt] (gate cols padded to Gp)
    b_ref,       # (3, Gp) f32  slab: [fused input gate bias | b_hn | b_out@Wt+b_out]
    out_ref,     # (B, H)  f32
    h_ref,       # VMEM scratch (B, H) f32 — GRU state carried across time chunks
):
    B, Tc, H = lctx_ref.shape
    Gp = w_ref.shape[1]
    c = pl.program_id(0)

    @pl.when(c == 0)
    def _():
        h_ref[...] = jnp.zeros_like(h_ref)

    # Hoisted per-chunk input-side projection: ONE lane-dense (B*Tc,H)@(H,Gp)
    # bf16 matmul with f32 accumulation; input-side gate biases folded in once.
    x = lctx_ref[...].reshape(B * Tc, H).astype(jnp.bfloat16)
    gi = jnp.dot(x, w_ref[0:H, :], preferred_element_type=jnp.float32)
    gi = (gi + b_ref[0:1, :]).reshape(B, Tc, Gp)

    # Loop invariants hoisted (no per-step re-broadcast / re-slice of weights).
    w_h = w_ref[H:2 * H, :]                                # (H, Gp) bf16
    b_hn = jnp.broadcast_to(b_ref[1:2, 0:H], (B, H))       # (B, H) f32

    h = h_ref[...]                                         # f32 carry
    # Serial recurrence, statically unrolled over the chunk (Tc <= 32): gi
    # slices are static and off the h dependency chain; gate math stays f32.
    for t in range(Tc):
        gi_t = gi[:, t, :]                                 # (B, Gp)
        gh = jnp.dot(h.astype(jnp.bfloat16), w_h,
                     preferred_element_type=jnp.float32)   # single h-side matmul
        rz = jax.nn.sigmoid(gi_t[:, :2 * H] + gh[:, :2 * H])   # fused r|z sigmoid
        r = rz[:, :H]
        z = rz[:, H:2 * H]
        # NOTE: b_hn kept as a hoisted VPU add; folding it into the h-matmul
        # would need a per-step lane-concat of a ones column (net-neutral).
        n = jnp.tanh(gi_t[:, 2 * H:3 * H] + r * (gh[:, 2 * H:3 * H] + b_hn))
        h = (1.0 - z) * n + z * h
    h_ref[...] = h

    @pl.when(c == pl.num_programs(0) - 1)
    def _():
        # Fused tail: out = sbert@Wt + (h+g_past)@(Wt@Wt) + (b_out@Wt + b_out)
        xt = jnp.concatenate([sbert_ref[...], h + gpast_ref[...]],
                             axis=1).astype(jnp.bfloat16)           # (B, 2H)
        o = jnp.dot(xt, w_ref[2 * H:4 * H, :],
                    preferred_element_type=jnp.float32)             # (B, Gp)
        out_ref[...] = (o[:, :H] + b_ref[2:3, 0:H]).astype(out_ref.dtype)


def global_context_forward(sbert, l_context, g_past, params, *, time_chunk=32):
    """sbert: (B, H), l_context: (B, L, H), g_past: (B, H) or None."""
    B, L, H = l_context.shape
    f32 = jnp.float32
    if g_past is None:
        g_past = jnp.zeros((B, H), f32)

    # Largest divisor of L that is <= time_chunk so every grid chunk is full.
    # TODO(synk): ragged L would need per-step masking inside the chunk.
    Tc = max(d for d in range(1, min(L, time_chunk) + 1) if L % d == 0)
    num_chunks = L // Tc

    Gp = ((3 * H + 127) // 128) * 128   # lane-dense padded gate width (96 -> 128)

    w_ih = params["gru_w_ih"].astype(f32)    # (3H, H), rows [r|z|n]
    w_hh = params["gru_w_hh"].astype(f32)
    b_ih = params["gru_b_ih"].astype(f32)
    b_hh = params["gru_b_hh"].astype(f32)
    w_out = params["out_w"].astype(f32)      # (H, H)
    b_out = params["out_b"].astype(f32)

    def pad_cols(a):
        return jnp.pad(a, ((0, 0), (0, Gp - a.shape[1])))

    def pad_row(v):
        return jnp.pad(v, (0, Gp - v.shape[0]))

    Wt = w_out.T                 # y = x @ Wt + b convention
    Wt2 = Wt @ Wt                # fused tail (f32, then cast with the slab)

    # One bf16 weight slab (4H, Gp): input->gates, hidden->gates, Wt, Wt@Wt.
    w_slab = jnp.concatenate([
        pad_cols(w_ih.T),        # rows [0 , H)
        pad_cols(w_hh.T),        # rows [H , 2H)
        pad_cols(Wt),            # rows [2H, 3H)
        pad_cols(Wt2),           # rows [3H, 4H)
    ], axis=0).astype(jnp.bfloat16)

    # One f32 bias slab (3, Gp).
    b_slab = jnp.stack([
        pad_row(jnp.concatenate([b_ih[0:H] + b_hh[0:H],
                                 b_ih[H:2 * H] + b_hh[H:2 * H],
                                 b_ih[2 * H:3 * H]])),      # [b_r | b_z | b_in | 0]
        pad_row(b_hh[2 * H:3 * H]),                          # b_hn (inside r*(.))
        pad_row(b_out @ Wt + b_out),                         # fused tail bias
    ]).astype(f32)

    out = pl.pallas_call(
        _global_context_kernel,
        out_shape=jax.ShapeDtypeStruct((B, H), f32),
        grid=(num_chunks,),
        in_specs=[
            pl.BlockSpec((B, Tc, H), lambda c: (0, c, 0)),   # per-chunk lctx tile
            pl.BlockSpec((B, H), lambda c: (0, 0)),
            pl.BlockSpec((B, H), lambda c: (0, 0)),
            pl.BlockSpec((4 * H, Gp), lambda c: (0, 0)),
            pl.BlockSpec((3, Gp), lambda c: (0, 0)),
        ],
        out_specs=pl.BlockSpec((B, H), lambda c: (0, 0)),
        scratch_shapes=[pltpu.VMEM((B, H), f32)],
        compiler_params=pltpu.CompilerParams(
            dimension_semantics=("arbitrary",),
            vmem_limit_bytes=32 * 1024 * 1024),
    )(l_context, sbert.astype(f32), g_past.astype(f32), w_slab, b_slab)
    return out


def global_context_reference(sbert, l_context, g_past, params):
    """Pure-JAX f32 reference mirroring the PyTorch forward (for validation)."""
    B, L, H = l_context.shape
    w_ih, w_hh = params["gru_w_ih"], params["gru_w_hh"]
    b_ih, b_hh = params["gru_b_ih"], params["gru_b_hh"]

    def step(h, x):
        gi = x @ w_ih.T + b_ih
        gh = h @ w_hh.T + b_hh
        i_r, i_z, i_n = gi[:, :H], gi[:, H:2 * H], gi[:, 2 * H:]
        h_r, h_z, h_n = gh[:, :H], gh[:, H:2 * H], gh[:, 2 * H:]
        r = jax.nn.sigmoid(i_r + h_r)
        z = jax.nn.sigmoid(i_z + h_z)
        n = jnp.tanh(i_n + r * h_n)
        h_new = (1.0 - z) * n + z * h
        return h_new, h_new

    h0 = jnp.zeros((B, H), jnp.float32)
    h_last, _ = lax.scan(step, h0, jnp.transpose(l_context, (1, 0, 2)))

    def out_linear(x):
        return x @ params["out_w"].T + params["out_b"]

    gp = h_last + (g_past if g_past is not None else 0.0)
    gp = out_linear(gp)
    s = sbert + gp
    return out_linear(s)


def init_params(key, hidden):
    """Deterministic synthetic init, PyTorch-like uniform(-1/sqrt(H), 1/sqrt(H))."""
    ks = jax.random.split(key, 8)
    bound = 1.0 / jnp.sqrt(hidden)
    u = lambda k, shape: jax.random.uniform(
        k, shape, jnp.float32, minval=-bound, maxval=bound)
    return {
        "gru_w_ih": u(ks[0], (3 * hidden, hidden)),
        "gru_w_hh": u(ks[1], (3 * hidden, hidden)),
        "gru_b_ih": u(ks[2], (3 * hidden,)),
        "gru_b_hh": u(ks[3], (3 * hidden,)),
        # h_linear exists in __init__ but is unused in forward; init for parity.
        "h_w": u(ks[4], (hidden, hidden)),
        "h_b": u(ks[5], (hidden,)),
        "out_w": u(ks[6], (hidden, hidden)),
        "out_b": u(ks[7], (hidden,)),
    }


if __name__ == "__main__":
    B, L, H = 2, 8, 32  # batch, local-context length, encoder_hidden

    key = jax.random.PRNGKey(0)
    k_sb, k_lc, k_gp, k_p = jax.random.split(key, 4)
    sbert = jax.random.normal(k_sb, (B, H), jnp.float32)
    l_context = jax.random.normal(k_lc, (B, L, H), jnp.float32)
    g_past = jax.random.normal(k_gp, (B, H), jnp.float32)
    params = init_params(k_p, H)

    g_present = global_context_forward(sbert, l_context, g_past, params)
    g_present = jax.block_until_ready(g_present)

    ref = global_context_reference(sbert, l_context, g_past, params)
    assert g_present.shape == (B, H)
    # bf16 weights/activations in the matmuls (incl. fused Wt@Wt tail) vs f32 ref.
    assert jnp.allclose(g_present, ref, atol=3e-2, rtol=3e-2), (
        float(jnp.max(jnp.abs(g_present - ref))))

    print("KERNEL_OK")
</pallas_src>

<mosaic_0001>
module attributes {stable_mosaic.version = 11 : i64} {
  func.func @_global_context_kernel(%arg0: i32, %arg1: memref<2x8x32xf32, #tpu.memory_space<vmem>>, %arg2: memref<2x32xf32, #tpu.memory_space<vmem>>, %arg3: memref<2x32xf32, #tpu.memory_space<vmem>>, %arg4: memref<128x128xbf16, #tpu.memory_space<vmem>>, %arg5: memref<3x128xf32, #tpu.memory_space<vmem>>, %arg6: memref<2x32xf32, #tpu.memory_space<vmem>>, %arg7: memref<2x32xf32, #tpu.memory_space<vmem>>) attributes {dimension_semantics = [#tpu.dimension_semantics<arbitrary>], iteration_bounds = array<i64: 1>, scalar_prefetch = 0 : i64, scratch_operands = 1 : i64, tpu.core_type = #tpu.core_type<tc>, window_params = [{transform_indices = @transform_0, window_bounds = array<i64: 2, 8, 32>}, {pipeline_mode = #tpu.pipeline_mode<synchronous>, transform_indices = @transform_1, window_bounds = array<i64: 2, 32>}, {pipeline_mode = #tpu.pipeline_mode<synchronous>, transform_indices = @transform_2, window_bounds = array<i64: 2, 32>}, {pipeline_mode = #tpu.pipeline_mode<synchronous>, transform_indices = @transform_3, window_bounds = array<i64: 128, 128>}, {pipeline_mode = #tpu.pipeline_mode<synchronous>, transform_indices = @transform_4, window_bounds = array<i64: 3, 128>}, {pipeline_mode = #tpu.pipeline_mode<synchronous>, transform_indices = @transform_5, window_bounds = array<i64: 2, 32>}]} {
    %c0_i32 = arith.constant 0 : i32
    %0 = arith.cmpi eq, %arg0, %c0_i32 : i32
    %1 = arith.extui %0 : i1 to i32
    %c0_i32_0 = arith.constant 0 : i32
    %2 = arith.cmpi ne, %1, %c0_i32_0 : i32
    scf.if %2 {
      %cst_39 = arith.constant 0.000000e+00 : f32
      %221 = vector.broadcast %cst_39 : f32 to vector<2x32xf32>
      %c0_40 = arith.constant 0 : index
      %c0_41 = arith.constant 0 : index
      %222 = vector.load %arg7[%c0_40, %c0_41] : memref<2x32xf32, #tpu.memory_space<vmem>>, vector<2x32xf32>
      tpu.vector_store %arg7[%c0_40, %c0_41], %221 {strides = array<i32>} : memref<2x32xf32, #tpu.memory_space<vmem>>, vector<2x32xf32>,
    } else {
    }
    %c0 = arith.constant 0 : index
    %c0_1 = arith.constant 0 : index
    %c0_2 = arith.constant 0 : index
    %3 = vector.load %arg1[%c0, %c0_1, %c0_2] : memref<2x8x32xf32, #tpu.memory_space<vmem>>, vector<2x8x32xf32>
    %4 = vector.shape_cast %3 : vector<2x8x32xf32> to vector<16x32xf32>
    %5 = arith.truncf %4 : vector<16x32xf32> to vector<16x32xbf16>
    %c0_3 = arith.constant 0 : index
    %c0_4 = arith.constant 0 : index
    %6 = vector.load %arg4[%c0_3, %c0_4] : memref<128x128xbf16, #tpu.memory_space<vmem>>, vector<32x128xbf16>
    %cst = arith.constant dense<0.000000e+00> : vector<16x128xf32>
    %7 = tpu.matmul %5, %6, %cst {dimension_numbers = #tpu.dot_dimension_numbers<[1], [0], [0], [1], [0, 0, 1, 1], [], []>} : vector<16x32xbf16>, vector<32x128xbf16>, vector<16x128xf32> -> vector<16x128xf32>
    %c0_5 = arith.constant 0 : index
    %c0_6 = arith.constant 0 : index
    %8 = vector.load %arg5[%c0_5, %c0_6] : memref<3x128xf32, #tpu.memory_space<vmem>>, vector<1x128xf32>
    %9 = vector.broadcast %8 : vector<1x128xf32> to vector<16x128xf32>
    %10 = arith.addf %7, %9 : vector<16x128xf32>
    %11 = vector.shape_cast %10 : vector<16x128xf32> to vector<2x8x128xf32>
    %c32 = arith.constant 32 : index
    %c0_7 = arith.constant 0 : index
    %12 = vector.load %arg4[%c32, %c0_7] : memref<128x128xbf16, #tpu.memory_space<vmem>>, vector<32x128xbf16>
    %c1 = arith.constant 1 : index
    %c0_8 = arith.constant 0 : index
    %13 = vector.load %arg5[%c1, %c0_8] : memref<3x128xf32, #tpu.memory_space<vmem>>, vector<1x32xf32>
    %14 = vector.shape_cast %13 : vector<1x32xf32> to vector<1x32xf32>
    %15 = vector.broadcast %14 : vector<1x32xf32> to vector<2x32xf32>
    %c0_9 = arith.constant 0 : index
    %c0_10 = arith.constant 0 : index
    %16 = vector.load %arg7[%c0_9, %c0_10] : memref<2x32xf32, #tpu.memory_space<vmem>>, vector<2x32xf32>
    %17 = vector.extract_strided_slice %11 {offsets = [0, 0, 0], sizes = [2, 1, 128], strides = [1, 1, 1]} : vector<2x8x128xf32> to vector<2x1x128xf32>
    %18 = vector.shape_cast %17 : vector<2x1x128xf32> to vector<2x128xf32>
    %19 = arith.truncf %16 : vector<2x32xf32> to vector<2x32xbf16>
    %cst_11 = arith.constant dense<0.000000e+00> : vector<2x128xf32>
    %20 = tpu.matmul %19, %12, %cst_11 {dimension_numbers = #tpu.dot_dimension_numbers<[1], [0], [0], [1], [0, 0, 1, 1], [], []>} : vector<2x32xbf16>, vector<32x128xbf16>, vector<2x128xf32> -> vector<2x128xf32>
    %21 = vector.extract_strided_slice %18 {offsets = [0, 0], sizes = [2, 64], strides = [1, 1]} : vector<2x128xf32> to vector<2x64xf32>
    %22 = vector.extract_strided_slice %20 {offsets = [0, 0], sizes = [2, 64], strides = [1, 1]} : vector<2x128xf32> to vector<2x64xf32>
    %23 = arith.addf %21, %22 : vector<2x64xf32>
    %24 = arith.negf %23 : vector<2x64xf32>
    %25 = math.exp %24 : vector<2x64xf32>
    %cst_12 = arith.constant 1.000000e+00 : f32
    %26 = vector.broadcast %cst_12 : f32 to vector<2x64xf32>
    %27 = arith.addf %26, %25 : vector<2x64xf32>
    %28 = arith.divf %26, %27 : vector<2x64xf32>
    %29 = vector.extract_strided_slice %28 {offsets = [0, 0], sizes = [2, 32], strides = [1, 1]} : vector<2x64xf32> to vector<2x32xf32>
    %30 = vector.extract_strided_slice %28 {offsets = [0, 32], sizes = [2, 32], strides = [1, 1]} : vector<2x64xf32> to vector<2x32xf32>
    %31 = vector.extract_strided_slice %18 {offsets = [0, 64], sizes = [2, 32], strides = [1, 1]} : vector<2x128xf32> to vector<2x32xf32>
    %32 = vector.extract_strided_slice %20 {offsets = [0, 64], sizes = [2, 32], strides = [1, 1]} : vector<2x128xf32> to vector<2x32xf32>
    %33 = arith.addf %32, %15 : vector<2x32xf32>
    %34 = arith.mulf %29, %33 : vector<2x32xf32>
    %35 = arith.addf %31, %34 : vector<2x32xf32>
    %36 = math.tanh %35 : vector<2x32xf32>
    %cst_13 = arith.constant 1.000000e+00 : f32
    %37 = vector.broadcast %cst_13 : f32 to vector<2x32xf32>
    %38 = arith.subf %37, %30 : vector<2x32xf32>
    %39 = arith.mulf %38, %36 : vector<2x32xf32>
    %40 = arith.mulf %30, %16 : vector<2x32xf32>
    %41 = arith.addf %39, %40 : vector<2x32xf32>
    %42 = vector.extract_strided_slice %11 {offsets = [0, 1, 0], sizes = [2, 1, 128], strides = [1, 1, 1]} : vector<2x8x128xf32> to vector<2x1x128xf32>
    %43 = vector.shape_cast %42 : vector<2x1x128xf32> to vector<2x128xf32>
    %44 = arith.truncf %41 : vector<2x32xf32> to vector<2x32xbf16>
    %cst_14 = arith.constant dense<0.000000e+00> : vector<2x128xf32>
    %45 = tpu.matmul %44, %12, %cst_14 {dimension_numbers = #tpu.dot_dimension_numbers<[1], [0], [0], [1], [0, 0, 1, 1], [], []>} : vector<2x32xbf16>, vector<32x128xbf16>, vector<2x128xf32> -> vector<2x128xf32>
    %46 = vector.extract_strided_slice %43 {offsets = [0, 0], sizes = [2, 64], strides = [1, 1]} : vector<2x128xf32> to vector<2x64xf32>
    %47 = vector.extract_strided_slice %45 {offsets = [0, 0], sizes = [2, 64], strides = [1, 1]} : vector<2x128xf32> to vector<2x64xf32>
    %48 = arith.addf %46, %47 : vector<2x64xf32>
    %49 = arith.negf %48 : vector<2x64xf32>
    %50 = math.exp %49 : vector<2x64xf32>
    %cst_15 = arith.constant 1.000000e+00 : f32
    %51 = vector.broadcast %cst_15 : f32 to vector<2x64xf32>
    %52 = arith.addf %51, %50 : vector<2x64xf32>
    %53 = arith.divf %51, %52 : vector<2x64xf32>
    %54 = vector.extract_strided_slice %53 {offsets = [0, 0], sizes = [2, 32], strides = [1, 1]} : vector<2x64xf32> to vector<2x32xf32>
    %55 = vector.extract_strided_slice %53 {offsets = [0, 32], sizes = [2, 32], strides = [1, 1]} : vector<2x64xf32> to vector<2x32xf32>
    %56 = vector.extract_strided_slice %43 {offsets = [0, 64], sizes = [2, 32], strides = [1, 1]} : vector<2x128xf32> to vector<2x32xf32>
    %57 = vector.extract_strided_slice %45 {offsets = [0, 64], sizes = [2, 32], strides = [1, 1]} : vector<2x128xf32> to vector<2x32xf32>
    %58 = arith.addf %57, %15 : vector<2x32xf32>
    %59 = arith.mulf %54, %58 : vector<2x32xf32>
    %60 = arith.addf %56, %59 : vector<2x32xf32>
    %61 = math.tanh %60 : vector<2x32xf32>
    %cst_16 = arith.constant 1.000000e+00 : f32
    %62 = vector.broadcast %cst_16 : f32 to vector<2x32xf32>
    %63 = arith.subf %62, %55 : vector<2x32xf32>
    %64 = arith.mulf %63, %61 : vector<2x32xf32>
    %65 = arith.mulf %55, %41 : vector<2x32xf32>
    %66 = arith.addf %64, %65 : vector<2x32xf32>
    %67 = vector.extract_strided_slice %11 {offsets = [0, 2, 0], sizes = [2, 1, 128], strides = [1, 1, 1]} : vector<2x8x128xf32> to vector<2x1x128xf32>
    %68 = vector.shape_cast %67 : vector<2x1x128xf32> to vector<2x128xf32>
    %69 = arith.truncf %66 : vector<2x32xf32> to vector<2x32xbf16>
    %cst_17 = arith.constant dense<0.000000e+00> : vector<2x128xf32>
    %70 = tpu.matmul %69, %12, %cst_17 {dimension_numbers = #tpu.dot_dimension_numbers<[1], [0], [0], [1], [0, 0, 1, 1], [], []>} : vector<2x32xbf16>, vector<32x128xbf16>, vector<2x128xf32> -> vector<2x128xf32>
    %71 = vector.extract_strided_slice %68 {offsets = [0, 0], sizes = [2, 64], strides = [1, 1]} : vector<2x128xf32> to vector<2x64xf32>
    %72 = vector.extract_strided_slice %70 {offsets = [0, 0], sizes = [2, 64], strides = [1, 1]} : vector<2x128xf32> to vector<2x64xf32>
    %73 = arith.addf %71, %72 : vector<2x64xf32>
    %74 = arith.negf %73 : vector<2x64xf32>
    %75 = math.exp %74 : vector<2x64xf32>
    %cst_18 = arith.constant 1.000000e+00 : f32
    %76 = vector.broadcast %cst_18 : f32 to vector<2x64xf32>
    %77 = arith.addf %76, %75 : vector<2x64xf32>
    %78 = arith.divf %76, %77 : vector<2x64xf32>
    %79 = vector.extract_strided_slice %78 {offsets = [0, 0], sizes = [2, 32], strides = [1, 1]} : vector<2x64xf32> to vector<2x32xf32>
    %80 = vector.extract_strided_slice %78 {offsets = [0, 32], sizes = [2, 32], strides = [1, 1]} : vector<2x64xf32> to vector<2x32xf32>
    %81 = vector.extract_strided_slice %68 {offsets = [0, 64], sizes = [2, 32], strides = [1, 1]} : vector<2x128xf32> to vector<2x32xf32>
    %82 = vector.extract_strided_slice %70 {offsets = [0, 64], sizes = [2, 32], strides = [1, 1]} : vector<2x128xf32> to vector<2x32xf32>
    %83 = arith.addf %82, %15 : vector<2x32xf32>
    %84 = arith.mulf %79, %83 : vector<2x32xf32>
    %85 = arith.addf %81, %84 : vector<2x32xf32>
    %86 = math.tanh %85 : vector<2x32xf32>
    %cst_19 = arith.constant 1.000000e+00 : f32
    %87 = vector.broadcast %cst_19 : f32 to vector<2x32xf32>
    %88 = arith.subf %87, %80 : vector<2x32xf32>
    %89 = arith.mulf %88, %86 : vector<2x32xf32>
    %90 = arith.mulf %80, %66 : vector<2x32xf32>
    %91 = arith.addf %89, %90 : vector<2x32xf32>
    %92 = vector.extract_strided_slice %11 {offsets = [0, 3, 0], sizes = [2, 1, 128], strides = [1, 1, 1]} : vector<2x8x128xf32> to vector<2x1x128xf32>
    %93 = vector.shape_cast %92 : vector<2x1x128xf32> to vector<2x128xf32>
    %94 = arith.truncf %91 : vector<2x32xf32> to vector<2x32xbf16>
    %cst_20 = arith.constant dense<0.000000e+00> : vector<2x128xf32>
    %95 = tpu.matmul %94, %12, %cst_20 {dimension_numbers = #tpu.dot_dimension_numbers<[1], [0], [0], [1], [0, 0, 1, 1], [], []>} : vector<2x32xbf16>, vector<32x128xbf16>, vector<2x128xf32> -> vector<2x128xf32>
    %96 = vector.extract_strided_slice %93 {offsets = [0, 0], sizes = [2, 64], strides = [1, 1]} : vector<2x128xf32> to vector<2x64xf32>
    %97 = vector.extract_strided_slice %95 {offsets = [0, 0], sizes = [2, 64], strides = [1, 1]} : vector<2x128xf32> to vector<2x64xf32>
    %98 = arith.addf %96, %97 : vector<2x64xf32>
    %99 = arith.negf %98 : vector<2x64xf32>
    %100 = math.exp %99 : vector<2x64xf32>
    %cst_21 = arith.constant 1.000000e+00 : f32
    %101 = vector.broadcast %cst_21 : f32 to vector<2x64xf32>
    %102 = arith.addf %101, %100 : vector<2x64xf32>
    %103 = arith.divf %101, %102 : vector<2x64xf32>
    %104 = vector.extract_strided_slice %103 {offsets = [0, 0], sizes = [2, 32], strides = [1, 1]} : vector<2x64xf32> to vector<2x32xf32>
    %105 = vector.extract_strided_slice %103 {offsets = [0, 32], sizes = [2, 32], strides = [1, 1]} : vector<2x64xf32> to vector<2x32xf32>
    %106 = vector.extract_strided_slice %93 {offsets = [0, 64], sizes = [2, 32], strides = [1, 1]} : vector<2x128xf32> to vector<2x32xf32>
    %107 = vector.extract_strided_slice %95 {offsets = [0, 64], sizes = [2, 32], strides = [1, 1]} : vector<2x128xf32> to vector<2x32xf32>
    %108 = arith.addf %107, %15 : vector<2x32xf32>
    %109 = arith.mulf %104, %108 : vector<2x32xf32>
    %110 = arith.addf %106, %109 : vector<2x32xf32>
    %111 = math.tanh %110 : vector<2x32xf32>
    %cst_22 = arith.constant 1.000000e+00 : f32
    %112 = vector.broadcast %cst_22 : f32 to vector<2x32xf32>
    %113 = arith.subf %112, %105 : vector<2x32xf32>
    %114 = arith.mulf %113, %111 : vector<2x32xf32>
    %115 = arith.mulf %105, %91 : vector<2x32xf32>
    %116 = arith.addf %114, %115 : vector<2x32xf32>
    %117 = vector.extract_strided_slice %11 {offsets = [0, 4, 0], sizes = [2, 1, 128], strides = [1, 1, 1]} : vector<2x8x128xf32> to vector<2x1x128xf32>
    %118 = vector.shape_cast %117 : vector<2x1x128xf32> to vector<2x128xf32>
    %119 = arith.truncf %116 : vector<2x32xf32> to vector<2x32xbf16>
    %cst_23 = arith.constant dense<0.000000e+00> : vector<2x128xf32>
    %120 = tpu.matmul %119, %12, %cst_23 {dimension_numbers = #tpu.dot_dimension_numbers<[1], [0], [0], [1], [0, 0, 1, 1], [], []>} : vector<2x32xbf16>, vector<32x128xbf16>, vector<2x128xf32> -> vector<2x128xf32>
    %121 = vector.extract_strided_slice %118 {offsets = [0, 0], sizes = [2, 64], strides = [1, 1]} : vector<2x128xf32> to vector<2x64xf32>
    %122 = vector.extract_strided_slice %120 {offsets = [0, 0], sizes = [2, 64], strides = [1, 1]} : vector<2x128xf32> to vector<2x64xf32>
    %123 = arith.addf %121, %122 : vector<2x64xf32>
    %124 = arith.negf %123 : vector<2x64xf32>
    %125 = math.exp %124 : vector<2x64xf32>
    %cst_24 = arith.constant 1.000000e+00 : f32
    %126 = vector.broadcast %cst_24 : f32 to vector<2x64xf32>
    %127 = arith.addf %126, %125 : vector<2x64xf32>
    %128 = arith.divf %126, %127 : vector<2x64xf32>
    %129 = vector.extract_strided_slice %128 {offsets = [0, 0], sizes = [2, 32], strides = [1, 1]} : vector<2x64xf32> to vector<2x32xf32>
    %130 = vector.extract_strided_slice %128 {offsets = [0, 32], sizes = [2, 32], strides = [1, 1]} : vector<2x64xf32> to vector<2x32xf32>
    %131 = vector.extract_strided_slice %118 {offsets = [0, 64], sizes = [2, 32], strides = [1, 1]} : vector<2x128xf32> to vector<2x32xf32>
    %132 = vector.extract_strided_slice %120 {offsets = [0, 64], sizes = [2, 32], strides = [1, 1]} : vector<2x128xf32> to vector<2x32xf32>
    %133 = arith.addf %132, %15 : vector<2x32xf32>
    %134 = arith.mulf %129, %133 : vector<2x32xf32>
    %135 = arith.addf %131, %134 : vector<2x32xf32>
    %136 = math.tanh %135 : vector<2x32xf32>
    %cst_25 = arith.constant 1.000000e+00 : f32
    %137 = vector.broadcast %cst_25 : f32 to vector<2x32xf32>
    %138 = arith.subf %137, %130 : vector<2x32xf32>
    %139 = arith.mulf %138, %136 : vector<2x32xf32>
    %140 = arith.mulf %130, %116 : vector<2x32xf32>
    %141 = arith.addf %139, %140 : vector<2x32xf32>
    %142 = vector.extract_strided_slice %11 {offsets = [0, 5, 0], sizes = [2, 1, 128], strides = [1, 1, 1]} : vector<2x8x128xf32> to vector<2x1x128xf32>
    %143 = vector.shape_cast %142 : vector<2x1x128xf32> to vector<2x128xf32>
    %144 = arith.truncf %141 : vector<2x32xf32> to vector<2x32xbf16>
    %cst_26 = arith.constant dense<0.000000e+00> : vector<2x128xf32>
    %145 = tpu.matmul %144, %12, %cst_26 {dimension_numbers = #tpu.dot_dimension_numbers<[1], [0], [0], [1], [0, 0, 1, 1], [], []>} : vector<2x32xbf16>, vector<32x128xbf16>, vector<2x128xf32> -> vector<2x128xf32>
    %146 = vector.extract_strided_slice %143 {offsets = [0, 0], sizes = [2, 64], strides = [1, 1]} : vector<2x128xf32> to vector<2x64xf32>
    %147 = vector.extract_strided_slice %145 {offsets = [0, 0], sizes = [2, 64], strides = [1, 1]} : vector<2x128xf32> to vector<2x64xf32>
    %148 = arith.addf %146, %147 : vector<2x64xf32>
    %149 = arith.negf %148 : vector<2x64xf32>
    %150 = math.exp %149 : vector<2x64xf32>
    %cst_27 = arith.constant 1.000000e+00 : f32
    %151 = vector.broadcast %cst_27 : f32 to vector<2x64xf32>
    %152 = arith.addf %151, %150 : vector<2x64xf32>
    %153 = arith.divf %151, %152 : vector<2x64xf32>
    %154 = vector.extract_strided_slice %153 {offsets = [0, 0], sizes = [2, 32], strides = [1, 1]} : vector<2x64xf32> to vector<2x32xf32>
    %155 = vector.extract_strided_slice %153 {offsets = [0, 32], sizes = [2, 32], strides = [1, 1]} : vector<2x64xf32> to vector<2x32xf32>
    %156 = vector.extract_strided_slice %143 {offsets = [0, 64], sizes = [2, 32], strides = [1, 1]} : vector<2x128xf32> to vector<2x32xf32>
    %157 = vector.extract_strided_slice %145 {offsets = [0, 64], sizes = [2, 32], strides = [1, 1]} : vector<2x128xf32> to vector<2x32xf32>
    %158 = arith.addf %157, %15 : vector<2x32xf32>
    %159 = arith.mulf %154, %158 : vector<2x32xf32>
    %160 = arith.addf %156, %159 : vector<2x32xf32>
    %161 = math.tanh %160 : vector<2x32xf32>
    %cst_28 = arith.constant 1.000000e+00 : f32
    %162 = vector.broadcast %cst_28 : f32 to vector<2x32xf32>
    %163 = arith.subf %162, %155 : vector<2x32xf32>
    %164 = arith.mulf %163, %161 : vector<2x32xf32>
    %165 = arith.mulf %155, %141 : vector<2x32xf32>
    %166 = arith.addf %164, %165 : vector<2x32xf32>
    %167 = vector.extract_strided_slice %11 {offsets = [0, 6, 0], sizes = [2, 1, 128], strides = [1, 1, 1]} : vector<2x8x128xf32> to vector<2x1x128xf32>
    %168 = vector.shape_cast %167 : vector<2x1x128xf32> to vector<2x128xf32>
    %169 = arith.truncf %166 : vector<2x32xf32> to vector<2x32xbf16>
    %cst_29 = arith.constant dense<0.000000e+00> : vector<2x128xf32>
    %170 = tpu.matmul %169, %12, %cst_29 {dimension_numbers = #tpu.dot_dimension_numbers<[1], [0], [0], [1], [0, 0, 1, 1], [], []>} : vector<2x32xbf16>, vector<32x128xbf16>, vector<2x128xf32> -> vector<2x128xf32>
    %171 = vector.extract_strided_slice %168 {offsets = [0, 0], sizes = [2, 64], strides = [1, 1]} : vector<2x128xf32> to vector<2x64xf32>
    %172 = vector.extract_strided_slice %170 {offsets = [0, 0], sizes = [2, 64], strides = [1, 1]} : vector<2x128xf32> to vector<2x64xf32>
    %173 = arith.addf %171, %172 : vector<2x64xf32>
    %174 = arith.negf %173 : vector<2x64xf32>
    %175 = math.exp %174 : vector<2x64xf32>
    %cst_30 = arith.constant 1.000000e+00 : f32
    %176 = vector.broadcast %cst_30 : f32 to vector<2x64xf32>
    %177 = arith.addf %176, %175 : vector<2x64xf32>
    %178 = arith.divf %176, %177 : vector<2x64xf32>
    %179 = vector.extract_strided_slice %178 {offsets = [0, 0], sizes = [2, 32], strides = [1, 1]} : vector<2x64xf32> to vector<2x32xf32>
    %180 = vector.extract_strided_slice %178 {offsets = [0, 32], sizes = [2, 32], strides = [1, 1]} : vector<2x64xf32> to vector<2x32xf32>
    %181 = vector.extract_strided_slice %168 {offsets = [0, 64], sizes = [2, 32], strides = [1, 1]} : vector<2x128xf32> to vector<2x32xf32>
    %182 = vector.extract_strided_slice %170 {offsets = [0, 64], sizes = [2, 32], strides = [1, 1]} : vector<2x128xf32> to vector<2x32xf32>
    %183 = arith.addf %182, %15 : vector<2x32xf32>
    %184 = arith.mulf %179, %183 : vector<2x32xf32>
    %185 = arith.addf %181, %184 : vector<2x32xf32>
    %186 = math.tanh %185 : vector<2x32xf32>
    %cst_31 = arith.constant 1.000000e+00 : f32
    %187 = vector.broadcast %cst_31 : f32 to vector<2x32xf32>
    %188 = arith.subf %187, %180 : vector<2x32xf32>
    %189 = arith.mulf %188, %186 : vector<2x32xf32>
    %190 = arith.mulf %180, %166 : vector<2x32xf32>
    %191 = arith.addf %189, %190 : vector<2x32xf32>
    %192 = vector.extract_strided_slice %11 {offsets = [0, 7, 0], sizes = [2, 1, 128], strides = [1, 1, 1]} : vector<2x8x128xf32> to vector<2x1x128xf32>
    %193 = vector.shape_cast %192 : vector<2x1x128xf32> to vector<2x128xf32>
    %194 = arith.truncf %191 : vector<2x32xf32> to vector<2x32xbf16>
    %cst_32 = arith.constant dense<0.000000e+00> : vector<2x128xf32>
    %195 = tpu.matmul %194, %12, %cst_32 {dimension_numbers = #tpu.dot_dimension_numbers<[1], [0], [0], [1], [0, 0, 1, 1], [], []>} : vector<2x32xbf16>, vector<32x128xbf16>, vector<2x128xf32> -> vector<2x128xf32>
    %196 = vector.extract_strided_slice %193 {offsets = [0, 0], sizes = [2, 64], strides = [1, 1]} : vector<2x128xf32> to vector<2x64xf32>
    %197 = vector.extract_strided_slice %195 {offsets = [0, 0], sizes = [2, 64], strides = [1, 1]} : vector<2x128xf32> to vector<2x64xf32>
    %198 = arith.addf %196, %197 : vector<2x64xf32>
    %199 = arith.negf %198 : vector<2x64xf32>
    %200 = math.exp %199 : vector<2x64xf32>
    %cst_33 = arith.constant 1.000000e+00 : f32
    %201 = vector.broadcast %cst_33 : f32 to vector<2x64xf32>
    %202 = arith.addf %201, %200 : vector<2x64xf32>
    %203 = arith.divf %201, %202 : vector<2x64xf32>
    %204 = vector.extract_strided_slice %203 {offsets = [0, 0], sizes = [2, 32], strides = [1, 1]} : vector<2x64xf32> to vector<2x32xf32>
    %205 = vector.extract_strided_slice %203 {offsets = [0, 32], sizes = [2, 32], strides = [1, 1]} : vector<2x64xf32> to vector<2x32xf32>
    %206 = vector.extract_strided_slice %193 {offsets = [0, 64], sizes = [2, 32], strides = [1, 1]} : vector<2x128xf32> to vector<2x32xf32>
    %207 = vector.extract_strided_slice %195 {offsets = [0, 64], sizes = [2, 32], strides = [1, 1]} : vector<2x128xf32> to vector<2x32xf32>
    %208 = arith.addf %207, %15 : vector<2x32xf32>
    %209 = arith.mulf %204, %208 : vector<2x32xf32>
    %210 = arith.addf %206, %209 : vector<2x32xf32>
    %211 = math.tanh %210 : vector<2x32xf32>
    %cst_34 = arith.constant 1.000000e+00 : f32
    %212 = vector.broadcast %cst_34 : f32 to vector<2x32xf32>
    %213 = arith.subf %212, %205 : vector<2x32xf32>
    %214 = arith.mulf %213, %211 : vector<2x32xf32>
    %215 = arith.mulf %205, %191 : vector<2x32xf32>
    %216 = arith.addf %214, %215 : vector<2x32xf32>
    %c0_35 = arith.constant 0 : index
    %c0_36 = arith.constant 0 : index
    %217 = vector.load %arg7[%c0_35, %c0_36] : memref<2x32xf32, #tpu.memory_space<vmem>>, vector<2x32xf32>
    tpu.vector_store %arg7[%c0_35, %c0_36], %216 {strides = array<i32>} : memref<2x32xf32, #tpu.memory_space<vmem>>, vector<2x32xf32>,
    %c0_i32_37 = arith.constant 0 : i32
    %218 = arith.cmpi eq, %arg0, %c0_i32_37 : i32
    %219 = arith.extui %218 : i1 to i32
    %c0_i32_38 = arith.constant 0 : i32
    %220 = arith.cmpi ne, %219, %c0_i32_38 : i32
    scf.if %220 {
      %c0_39 = arith.constant 0 : index
      %c0_40 = arith.constant 0 : index
      %221 = vector.load %arg2[%c0_39, %c0_40] : memref<2x32xf32, #tpu.memory_space<vmem>>, vector<2x32xf32>
      %c0_41 = arith.constant 0 : index
      %c0_42 = arith.constant 0 : index
      %222 = vector.load %arg3[%c0_41, %c0_42] : memref<2x32xf32, #tpu.memory_space<vmem>>, vector<2x32xf32>
      %223 = arith.addf %216, %222 : vector<2x32xf32>
      %224 = tpu.concatenate %221, %223 in 1 : vector<2x32xf32>, vector<2x32xf32> -> vector<2x64xf32>
      %225 = arith.truncf %224 : vector<2x64xf32> to vector<2x64xbf16>
      %c64 = arith.constant 64 : index
      %c0_43 = arith.constant 0 : index
      %226 = vector.load %arg4[%c64, %c0_43] : memref<128x128xbf16, #tpu.memory_space<vmem>>, vector<64x128xbf16>
      %cst_44 = arith.constant dense<0.000000e+00> : vector<2x128xf32>
      %227 = tpu.matmul %225, %226, %cst_44 {dimension_numbers = #tpu.dot_dimension_numbers<[1], [0], [0], [1], [0, 0, 1, 1], [], []>} : vector<2x64xbf16>, vector<64x128xbf16>, vector<2x128xf32> -> vector<2x128xf32>
      %228 = vector.extract_strided_slice %227 {offsets = [0, 0], sizes = [2, 32], strides = [1, 1]} : vector<2x128xf32> to vector<2x32xf32>
      %c2 = arith.constant 2 : index
      %c0_45 = arith.constant 0 : index
      %229 = vector.load %arg5[%c2, %c0_45] : memref<3x128xf32, #tpu.memory_space<vmem>>, vector<1x32xf32>
      %230 = vector.broadcast %229 : vector<1x32xf32> to vector<2x32xf32>
      %231 = arith.addf %228, %230 : vector<2x32xf32>
      %c0_46 = arith.constant 0 : index
      %c0_47 = arith.constant 0 : index
      %232 = vector.load %arg6[%c0_46, %c0_47] : memref<2x32xf32, #tpu.memory_space<vmem>>, vector<2x32xf32>
      tpu.vector_store %arg6[%c0_46, %c0_47], %231 {strides = array<i32>} : memref<2x32xf32, #tpu.memory_space<vmem>>, vector<2x32xf32>,
    } else {
    }
    return
  }
  func.func @transform_0(%arg0: i32) -> (i32, i32, i32) {
    %c0_i32 = arith.constant 0 : i32
    %c0_i32_0 = arith.constant 0 : i32
    %c0_i32_1 = arith.constant 0 : i32
    return %c0_i32, %arg0, %c0_i32_0 : i32, i32, i32
  }
  func.func @transform_1(%arg0: i32) -> (i32, i32) {
    %c0_i32 = arith.constant 0 : i32
    %c0_i32_0 = arith.constant 0 : i32
    %c0_i32_1 = arith.constant 0 : i32
    return %c0_i32, %c0_i32_0 : i32, i32
  }
  func.func @transform_2(%arg0: i32) -> (i32, i32) {
    %c0_i32 = arith.constant 0 : i32
    %c0_i32_0 = arith.constant 0 : i32
    %c0_i32_1 = arith.constant 0 : i32
    return %c0_i32, %c0_i32_0 : i32, i32
  }
  func.func @transform_3(%arg0: i32) -> (i32, i32) {
    %c0_i32 = arith.constant 0 : i32
    %c0_i32_0 = arith.constant 0 : i32
    %c0_i32_1 = arith.constant 0 : i32
    return %c0_i32, %c0_i32_0 : i32, i32
  }
  func.func @transform_4(%arg0: i32) -> (i32, i32) {
    %c0_i32 = arith.constant 0 : i32
    %c0_i32_0 = arith.constant 0 : i32
    %c0_i32_1 = arith.constant 0 : i32
    return %c0_i32, %c0_i32_0 : i32, i32
  }
  func.func @transform_5(%arg0: i32) -> (i32, i32) {
    %c0_i32 = arith.constant 0 : i32
    %c0_i32_0 = arith.constant 0 : i32
    %c0_i32_1 = arith.constant 0 : i32
    return %c0_i32, %c0_i32_0 : i32, i32
  }
}

</mosaic_0001>

<llo_original>
// kernel: tpu_custom_call.1
$region0: #{tpu_custom_call.1}
  #allocation0 [shape = 'u32[]', space=smem, size = 0x4, offset = 0x4, fixed_abs, tag = 'smem constant byte address 0x4 - core index']
  #allocation1 [shape = 'u32[72,128]{1,0:T(1,128)}', space=vmem, size = 0x9000, scoped, tag = 'internal scratch']
  #allocation2 [shape = 'f32[2,32]{1,0:T(2,128)}', space=vmem, size = 0x400, scoped, tag = 'scratch operand']
  %s0 = inlined_call_operand.hbm [shape: f32[2,8,32], index: 0, kind: input, shape index: {}]
  %s1 = inlined_call_operand.hbm [shape: f32[2,32], index: 1, kind: input, shape index: {}]
  %s2 = inlined_call_operand.hbm [shape: f32[2,32], index: 2, kind: input, shape index: {}]
  %s3 = inlined_call_operand.hbm [shape: bf16[128,128], index: 3, kind: input, shape index: {}]
  %s4 = inlined_call_operand.hbm [shape: f32[3,128], index: 4, kind: input, shape index: {}]
  %s5 = inlined_call_operand.hbm [shape: f32[2,32], index: 5, kind: output, shape index: {}]
  %s6 = sld [smem:[#allocation0]]
  $region58: #{tpu_custom_call.1} parent=0
    _
  %s8 = ssub.s32 1, %s6
  %s9 = scalar_select 0, %s8, %s6
  $region1: #{tpu_custom_call.1} parent=0
    #allocation3 [shape = 'u8[8192]{0}', space=vmem, size = 0x2000, scoped, tag = 'input window, operand 0, single buffered']
    #allocation4 [shape = 's32[1]{0}', space=sflag, size = 0x4, scoped, tag = 'scoped memory for tpu_custom_call.1']
    #allocation5 [shape = 's32[1]{0}', space=sflag, size = 0x4, scoped, tag = 'scoped memory for tpu_custom_call.1']
    #allocation6 [shape = 'u8[1024]{0}', space=vmem, size = 0x400, scoped, tag = 'input window, operand 1, single buffered']
    #allocation7 [shape = 's32[1]{0}', space=sflag, size = 0x4, scoped, tag = 'scoped memory for tpu_custom_call.1']
    #allocation8 [shape = 'u8[1024]{0}', space=vmem, size = 0x400, scoped, tag = 'input window, operand 2, single buffered']
    #allocation9 [shape = 'u8[32768]{0}', space=vmem, size = 0x8000, scoped, tag = 'input window, operand 3, single buffered']
    #allocation10 [shape = 's32[1]{0}', space=sflag, size = 0x4, scoped, tag = 'scoped memory for tpu_custom_call.1']
    #allocation11 [shape = 'u8[2048]{0}', space=vmem, size = 0x800, scoped, tag = 'input window, operand 4, single buffered']
    #allocation12 [shape = 'u8[1024]{0}', space=vmem, size = 0x400, scoped, tag = 'output window, operand 0, single buffered']
    %10 = vsyncpa [#allocation4], 0
    %11 = vsyncpa [#allocation7], 0
    %12 = vsyncpa [#allocation10], 0
    %13 = vsyncpa [#allocation5], 0
    // Predicated region
    $region2: #{tpu_custom_call.1} parent=1 // pred_check
      _
    $region3: #{tpu_custom_call.1} parent=1 // pred_check_branch
      %15 = sbr.rel (0) target = $region5
    $region4: #{tpu_custom_call.1} parent=1 // pred_region
      %17 = vsyncadd [#allocation4], 0
      %s18 = sshll.u32 %s0, 4
      %s19 = int_to_ptr.hbm [resolvable:$true] %s18
      %s20 = sshll.u32 [#allocation3], 4
      %s21 = int_to_ptr.vmem [resolvable:$true] %s20
      %26 = dma.hbm_to_vmem [thread:$0]  %s19, 256, %s21, [#allocation4], 128, 128, 8
    $region5: #{tpu_custom_call.1} parent=1 // pred_fallthru
      _
    // Predicated region
    $region6: #{tpu_custom_call.1} parent=1 // pred_check
      _
    $region7: #{tpu_custom_call.1} parent=1 // pred_check_branch
      %28 = sbr.rel (0) target = $region9
    $region8: #{tpu_custom_call.1} parent=1 // pred_region
      %30 = vsyncadd [#allocation7], 0
      %s32 = sshll.u32 %s1, 4
      %s33 = int_to_ptr.hbm [resolvable:$true] %s32
      %s34 = sshll.u32 [#allocation6], 4
      %s35 = int_to_ptr.vmem [resolvable:$true] %s34
      %37 = dma.hbm_to_vmem [thread:$0]  %s33, 32, %s35, [#allocation7]
    $region9: #{tpu_custom_call.1} parent=1 // pred_fallthru
      _
    // Predicated region
    $region10: #{tpu_custom_call.1} parent=1 // pred_check
      _
    $region11: #{tpu_custom_call.1} parent=1 // pred_check_branch
      %39 = sbr.rel (0) target = $region13
    $region12: #{tpu_custom_call.1} parent=1 // pred_region
      %41 = vsyncadd [#allocation7], 0
      %s43 = sshll.u32 %s2, 4
      %s44 = int_to_ptr.hbm [resolvable:$true] %s43
      %s45 = sshll.u32 [#allocation8], 4
      %s46 = int_to_ptr.vmem [resolvable:$true] %s45
      %48 = dma.hbm_to_vmem [thread:$0]  %s44, 32, %s46, [#allocation7]
    $region13: #{tpu_custom_call.1} parent=1 // pred_fallthru
      _
    // Predicated region
    $region14: #{tpu_custom_call.1} parent=1 // pred_check
      _
    $region15: #{tpu_custom_call.1} parent=1 // pred_check_branch
      %50 = sbr.rel (0) target = $region17
    $region16: #{tpu_custom_call.1} parent=1 // pred_region
      %52 = vsyncadd [#allocation10], 0
      %s53 = sshll.u32 %s3, 4
      %s54 = int_to_ptr.hbm [resolvable:$true] %s53
      %s55 = sshll.u32 [#allocation9], 4
      %s56 = int_to_ptr.vmem [resolvable:$true] %s55
      %61 = dma.hbm_to_vmem [thread:$0]  %s54, 1024, %s56, [#allocation10], 64, 64, 4
    $region17: #{tpu_custom_call.1} parent=1 // pred_fallthru
      _
    // Predicated region
    $region18: #{tpu_custom_call.1} parent=1 // pred_check
      _
    $region19: #{tpu_custom_call.1} parent=1 // pred_check_branch
      %63 = sbr.rel (0) target = $region21
    $region20: #{tpu_custom_call.1} parent=1 // pred_region
      %65 = vsyncadd [#allocation10], 0
      %s67 = sshll.u32 %s4, 4
      %s68 = int_to_ptr.hbm [resolvable:$true] %s67
      %s69 = sshll.u32 [#allocation11], 4
      %s70 = int_to_ptr.vmem [resolvable:$true] %s69
      %72 = dma.hbm_to_vmem [thread:$0]  %s68, 64, %s70, [#allocation10]
    $region21: #{tpu_custom_call.1} parent=1 // pred_fallthru
      _
    // Predicated region
    $region22: #{tpu_custom_call.1} parent=1 // pred_check
      _
    $region23: #{tpu_custom_call.1} parent=1 // pred_check_branch
      %74 = sbr.rel (0) target = $region25
    $region24: #{tpu_custom_call.1} parent=1 // pred_region
      %76 = dma.done [#allocation4], 256
    $region25: #{tpu_custom_call.1} parent=1 // pred_fallthru
      _
    // Predicated region
    $region26: #{tpu_custom_call.1} parent=1 // pred_check
      _
    $region27: #{tpu_custom_call.1} parent=1 // pred_check_branch
      %78 = sbr.rel (0) target = $region29
    $region28: #{tpu_custom_call.1} parent=1 // pred_region
      %80 = dma.done [#allocation7], 32
    $region29: #{tpu_custom_call.1} parent=1 // pred_fallthru
      _
    // Predicated region
    $region30: #{tpu_custom_call.1} parent=1 // pred_check
      _
    $region31: #{tpu_custom_call.1} parent=1 // pred_check_branch
      %82 = sbr.rel (0) target = $region33
    $region32: #{tpu_custom_call.1} parent=1 // pred_region
      %84 = dma.done [#allocation7], 32
    $region33: #{tpu_custom_call.1} parent=1 // pred_fallthru
      _
    // Predicated region
    $region34: #{tpu_custom_call.1} parent=1 // pred_check
      _
    $region35: #{tpu_custom_call.1} parent=1 // pred_check_branch
      %86 = sbr.rel (0) target = $region37
    $region36: #{tpu_custom_call.1} parent=1 // pred_region
      %88 = dma.done [#allocation10], 1024
    $region37: #{tpu_custom_call.1} parent=1 // pred_fallthru
      _
    // Predicated region
    $region38: #{tpu_custom_call.1} parent=1 // pred_check
      _
    $region39: #{tpu_custom_call.1} parent=1 // pred_check_branch
      %90 = sbr.rel (0) target = $region41
    $region40: #{tpu_custom_call.1} parent=1 // pred_region
      %92 = dma.done [#allocation10], 64
    $region41: #{tpu_custom_call.1} parent=1 // pred_fallthru
      _
    %p94 = scmp.eq.s32.totalorder 0, 0
    // Predicated region
    $region42: #{tpu_custom_call.1} parent=1 // pred_check
      %p95 = pneg %p94
    $region43: #{tpu_custom_call.1} parent=1 // pred_check_branch
      %97 = sbr.rel (%p95) target = $region45
    $region44: #{tpu_custom_call.1} parent=1 // pred_region
      %vm98 = vcmask 254976
      %99 = vst.msk [vmem:[#allocation2] sm:$0x3] %vm98, 0.0
    $region45: #{tpu_custom_call.1} parent=1 // pred_fallthru
      _
    %v100 = vld [vmem:[#allocation3] sm:$0xff]
    %v101 = vld [vmem:[#allocation3 + $0x8] sm:$0xff]
    %v102 = vpack.c.bf16 %v101, %v100
    %v103 = vld [vmem:[#allocation9] sm:$0xf]
    %v104 = vld [vmem:[#allocation9 + $0x4] sm:$0xf]
    %v105 = vld [vmem:[#allocation9 + $0x8] sm:$0xf]
    %v106 = vld [vmem:[#allocation9 + $0xc] sm:$0xf]
    %v107 = vld [vmem:[#allocation11] sm:$0x1]
    %v108 = vperm.slane %v107, 0
    %v113 = vunpack.c.l.b16 %v103
    %v114 = vunpack.c.l.b16 %v104
    %v115 = vunpack.c.l.b16 %v105
    %v116 = vunpack.c.l.b16 %v106
    %v117 = vpack.c.b16 %v114, %v113
    %v118 = vpack.c.b16 %v116, %v115
    %vm121 = vcmask 261120
    %v123 = vsel %vm121, %v102, 0
    %125 = vmatpush.bf16.msra.mxu0 0
    %126 = vmatpush.bf16.msra.mxu0 0
    %127 = vmatpush.bf16.msra.mxu0 0
    %128 = vmatpush.bf16.msra.mxu0 0
    %129 = vmatpush.bf16.msra.mxu0 0
    %130 = vmatpush.bf16.msra.mxu0 0
    %131 = vmatpush.bf16.msra.mxu0 %v118
    %132 = vmatpush.bf16.msra.mxu0 %v117
    %133 = vmatmul.bf16.gmra.mxu0 %v123
    %v134 = vpop.f32.mrf.mxu0
    %v135 = vadd.f32 %v108, %v134
    %v136 = vpop.f32.mrf.mxu0
    %v137 = vadd.f32 %v108, %v136
    %138 = vdwg.mxu0
    %v139 = vld [vmem:[#allocation9 + $0x10] sm:$0xf]
    %v140 = vld [vmem:[#allocation9 + $0x14] sm:$0xf]
    %v141 = vld [vmem:[#allocation9 + $0x18] sm:$0xf]
    %v142 = vld [vmem:[#allocation9 + $0x1c] sm:$0xf]
    %v143 = vld [vmem:[#allocation11 + $0x1] sm:$0x1]
    %v144 = vperm.slane %v143, 0
    %v145 = vld [vmem:[#allocation2] sm:$0x3]
    %v146 = vpack.c.bf16 %v145, %v145
    %v151 = vunpack.c.l.b16 %v139
    %v152 = vunpack.c.l.b16 %v140
    %v153 = vunpack.c.l.b16 %v141
    %v154 = vunpack.c.l.b16 %v142
    %v155 = vpack.c.b16 %v152, %v151
    %v156 = vpack.c.b16 %v154, %v153
    %v160 = vsel %vm121, %v146, 0
    %162 = vmatpush.bf16.msra.mxu0 0
    %163 = vmatpush.bf16.msra.mxu0 0
    %164 = vmatpush.bf16.msra.mxu0 0
    %165 = vmatpush.bf16.msra.mxu0 0
    %166 = vmatpush.bf16.msra.mxu0 0
    %167 = vmatpush.bf16.msra.mxu0 0
    %168 = vmatpush.bf16.msra.mxu0 %v156
    %169 = vmatpush.bf16.msra.mxu0 %v155
    %170 = vmatmul.bf16.gmra.mxu0 %v160
    %v171 = vpop.f32.mrf.mxu0
    %v172 = vadd.f32 0.0, %v171
    %v173 = vpop.f32.mrf.mxu0
    %174 = vdwg.mxu0
    %v176 = vrot.slane %v172, 1
    %v179 = vadd.f32 %v135, %v172
    %v180 = vadd.f32 %v137, %v176
    %v181 = vxor.u32 %v179, 2147483648
    %v182 = vxor.u32 %v180, 2147483648
    %v183 = vmul.f32 %v181, 1.442695
    %v184 = vpow.pop %v183
    %v185 = vmul.f32 %v182, 1.442695
    %v186 = vpow.pop %v185
    %v187 = vadd.f32 %v184, 1.0
    %v188 = vadd.f32 %v186, 1.0
    %v189 = vrcp.pop %v187
    %v190 = vmul.f32 %v187, %v189
    %v191 = vsub.f32 1.0, %v190
    %v192 = vmul.f32 %v189, %v191
    %v193 = vadd.f32 %v189, %v192
    %vm194 = vweird.f32 %v187
    %vm195 = vweird.f32 %v189
    %vm196 = vmor %vm194, %vm195
    %v197 = vsel %vm196, %v189, %v193
    %v198 = vand.u32 2147483647, %v187
    %vm199 = vcmp.eq.f32.partialorder %v198, 8.507059e+37
    %v200 = vand.u32 %v187, 2147483648
    %v201 = vor.u32 1.1754944e-38, %v200
    %v202 = vsel %vm199, %v201, %v197
    %v203 = vmul.f32 1.0, %v202
    %v204 = vrcp.pop %v188
    %v205 = vmul.f32 %v188, %v204
    %v206 = vsub.f32 1.0, %v205
    %v207 = vmul.f32 %v204, %v206
    %v208 = vadd.f32 %v204, %v207
    %vm209 = vweird.f32 %v188
    %vm210 = vweird.f32 %v204
    %vm211 = vmor %vm209, %vm210
    %v212 = vsel %vm211, %v204, %v208
    %v213 = vand.u32 2147483647, %v188
    %vm214 = vcmp.eq.f32.partialorder %v213, 8.507059e+37
    %v215 = vand.u32 %v188, 2147483648
    %v216 = vor.u32 1.1754944e-38, %v215
    %v217 = vsel %vm214, %v216, %v212
    %v218 = vmul.f32 1.0, %v217
    %220 = vrot.lane.b32.xlu0 %v144, 64
    %v221 = vpop.permute.xlu0 %220
    %v223 = vadd.f32 %v172, %v221
    %v225 = vrot.slane %v223, 1
    %226 = vrot.lane.b32.xlu0 %v223, 64
    %v227 = vpop.permute.xlu0 %226
    %228 = vrot.lane.b32.xlu0 %v225, 64
    %v229 = vpop.permute.xlu0 %228
    %v232 = vmul.f32 %v203, %v227
    %v233 = vmul.f32 %v218, %v229
    %236 = vrot.lane.b32.xlu0 %v232, 64
    %v237 = vpop.permute.xlu0 %236
    %238 = vrot.lane.b32.xlu0 %v233, 64
    %v239 = vpop.permute.xlu0 %238
    %v242 = vadd.f32 %v135, %v237
    %v243 = vadd.f32 %v137, %v239
    %v244 = vtanh.pop %v242
    %v245 = vtanh.pop %v243
    %v246 = vsub.f32 1.0, %v203
    %v247 = vsub.f32 1.0, %v218
    %250 = vrot.lane.b32.xlu0 %v244, 96
    %v251 = vpop.permute.xlu0 %250
    %252 = vrot.lane.b32.xlu0 %v245, 96
    %v253 = vpop.permute.xlu0 %252
    %v256 = vmul.f32 %v246, %v251
    %v257 = vmul.f32 %v247, %v253
    %v259 = vrot.slane %v145, 1
    %260 = vrot.lane.b32.xlu0 %v145, 32
    %v261 = vpop.permute.xlu0 %260
    %262 = vrot.lane.b32.xlu0 %v259, 32
    %v263 = vpop.permute.xlu0 %262
    %v266 = vmul.f32 %v203, %v261
    %v267 = vmul.f32 %v218, %v263
    %v268 = vadd.f32 %v256, %v266
    %v269 = vadd.f32 %v257, %v267
    %v270 = vpack.c.bf16 %v268, %v268
    %v271 = vpack.c.bf16 %v269, %v269
    %v274 = vunpack.c.l.b16 %v270
    %v275 = vunpack.c.l.b16 %v271
    %v276 = vrot.slane %v275, 7
    %vm277 = vcmask 1041409
    %v278 = vsel %vm277, %v276, %v274
    %v279 = vpack.c.b16 %v278, %v278
    %280 = vrot.lane.b32.xlu0 %v279, 96
    %v281 = vpop.permute.xlu0 %280
    %v283 = vsel %vm121, %v281, 0
    %285 = vmatpush.bf16.msra.mxu0 0
    %286 = vmatpush.bf16.msra.mxu0 0
    %287 = vmatpush.bf16.msra.mxu0 0
    %288 = vmatpush.bf16.msra.mxu0 0
    %289 = vmatpush.bf16.msra.mxu0 0
    %290 = vmatpush.bf16.msra.mxu0 0
    %291 = vmatpush.bf16.msra.mxu0 %v156
    %292 = vmatpush.bf16.msra.mxu0 %v155
    %293 = vmatmul.bf16.gmra.mxu0 %v283
    %v294 = vpop.f32.mrf.mxu0
    %v295 = vadd.f32 0.0, %v294
    %v296 = vpop.f32.mrf.mxu0
    %297 = vdwg.mxu0
    %v299 = vrot.slane %v295, 7
    %v302 = vadd.f32 %v135, %v299
    %v303 = vadd.f32 %v137, %v295
    %v304 = vxor.u32 %v302, 2147483648
    %v305 = vxor.u32 %v303, 2147483648
    %v306 = vmul.f32 %v304, 1.442695
    %v307 = vpow.pop %v306
    %v308 = vmul.f32 %v305, 1.442695
    %v309 = vpow.pop %v308
    %v310 = vadd.f32 %v307, 1.0
    %v311 = vadd.f32 %v309, 1.0
    %v312 = vrcp.pop %v310
    %v313 = vmul.f32 %v310, %v312
    %v314 = vsub.f32 1.0, %v313
    %v315 = vmul.f32 %v312, %v314
    %v316 = vadd.f32 %v312, %v315
    %vm317 = vweird.f32 %v310
    %vm318 = vweird.f32 %v312
    %vm319 = vmor %vm317, %vm318
    %v320 = vsel %vm319, %v312, %v316
    %v321 = vand.u32 2147483647, %v310
    %vm322 = vcmp.eq.f32.partialorder %v321, 8.507059e+37
    %v323 = vand.u32 %v310, 2147483648
    %v324 = vor.u32 1.1754944e-38, %v323
    %v325 = vsel %vm322, %v324, %v320
    %v326 = vmul.f32 1.0, %v325
    %v327 = vrcp.pop %v311
    %v328 = vmul.f32 %v311, %v327
    %v329 = vsub.f32 1.0, %v328
    %v330 = vmul.f32 %v327, %v329
    %v331 = vadd.f32 %v327, %v330
    %vm332 = vweird.f32 %v311
    %vm333 = vweird.f32 %v327
    %vm334 = vmor %vm332, %vm333
    %v335 = vsel %vm334, %v327, %v331
    %v336 = vand.u32 2147483647, %v311
    %vm337 = vcmp.eq.f32.partialorder %v336, 8.507059e+37
    %v338 = vand.u32 %v311, 2147483648
    %v339 = vor.u32 1.1754944e-38, %v338
    %v340 = vsel %vm337, %v339, %v335
    %v341 = vmul.f32 1.0, %v340
    %v342 = vadd.f32 %v295, %v221
    %v344 = vrot.slane %v342, 7
    %345 = vrot.lane.b32.xlu0 %v344, 64
    %v346 = vpop.permute.xlu0 %345
    %347 = vrot.lane.b32.xlu0 %v342, 64
    %v348 = vpop.permute.xlu0 %347
    %v351 = vmul.f32 %v326, %v346
    %v352 = vmul.f32 %v341, %v348
    %355 = vrot.lane.b32.xlu0 %v351, 64
    %v356 = vpop.permute.xlu0 %355
    %357 = vrot.lane.b32.xlu0 %v352, 64
    %v358 = vpop.permute.xlu0 %357
    %v361 = vadd.f32 %v135, %v356
    %v362 = vadd.f32 %v137, %v358
    %v363 = vtanh.pop %v361
    %v364 = vtanh.pop %v362
    %v365 = vsub.f32 1.0, %v326
    %v366 = vsub.f32 1.0, %v341
    %369 = vrot.lane.b32.xlu0 %v363, 96
    %v370 = vpop.permute.xlu0 %369
    %371 = vrot.lane.b32.xlu0 %v364, 96
    %v372 = vpop.permute.xlu0 %371
    %v375 = vmul.f32 %v365, %v370
    %v376 = vmul.f32 %v366, %v372
    %v379 = vrot.slane %v268, 7
    %v380 = vrot.slane %v269, 7
    %v383 = vmul.f32 %v326, %v379
    %v384 = vmul.f32 %v341, %v380
    %v385 = vadd.f32 %v375, %v383
    %v386 = vadd.f32 %v376, %v384
    %v387 = vpack.c.bf16 %v385, %v385
    %v388 = vpack.c.bf16 %v386, %v386
    %v391 = vunpack.c.l.b16 %v387
    %v392 = vunpack.c.l.b16 %v388
    %v393 = vrot.slane %v391, 1
    %v394 = vsel %vm277, %v392, %v393
    %v395 = vpack.c.b16 %v394, %v394
    %396 = vrot.lane.b32.xlu0 %v395, 96
    %v397 = vpop.permute.xlu0 %396
    %v399 = vsel %vm121, %v397, 0
    %401 = vmatpush.bf16.msra.mxu0 0
    %402 = vmatpush.bf16.msra.mxu0 0
    %403 = vmatpush.bf16.msra.mxu0 0
    %404 = vmatpush.bf16.msra.mxu0 0
    %405 = vmatpush.bf16.msra.mxu0 0
    %406 = vmatpush.bf16.msra.mxu0 0
    %407 = vmatpush.bf16.msra.mxu0 %v156
    %408 = vmatpush.bf16.msra.mxu0 %v155
    %409 = vmatmul.bf16.gmra.mxu0 %v399
    %v410 = vpop.f32.mrf.mxu0
    %v411 = vadd.f32 0.0, %v410
    %v412 = vpop.f32.mrf.mxu0
    %413 = vdwg.mxu0
    %v415 = vrot.slane %v411, 6
    %v416 = vrot.slane %v411, 7
    %v419 = vadd.f32 %v135, %v415
    %v420 = vadd.f32 %v137, %v416
    %v421 = vxor.u32 %v419, 2147483648
    %v422 = vxor.u32 %v420, 2147483648
    %v423 = vmul.f32 %v421, 1.442695
    %v424 = vpow.pop %v423
    %v425 = vmul.f32 %v422, 1.442695
    %v426 = vpow.pop %v425
    %v427 = vadd.f32 %v424, 1.0
    %v428 = vadd.f32 %v426, 1.0
    %v429 = vrcp.pop %v427
    %v430 = vmul.f32 %v427, %v429
    %v431 = vsub.f32 1.0, %v430
    %v432 = vmul.f32 %v429, %v431
    %v433 = vadd.f32 %v429, %v432
    %vm434 = vweird.f32 %v427
    %vm435 = vweird.f32 %v429
    %vm436 = vmor %vm434, %vm435
    %v437 = vsel %vm436, %v429, %v433
    %v438 = vand.u32 2147483647, %v427
    %vm439 = vcmp.eq.f32.partialorder %v438, 8.507059e+37
    %v440 = vand.u32 %v427, 2147483648
    %v441 = vor.u32 1.1754944e-38, %v440
    %v442 = vsel %vm439, %v441, %v437
    %v443 = vmul.f32 1.0, %v442
    %v444 = vrcp.pop %v428
    %v445 = vmul.f32 %v428, %v444
    %v446 = vsub.f32 1.0, %v445
    %v447 = vmul.f32 %v444, %v446
    %v448 = vadd.f32 %v444, %v447
    %vm449 = vweird.f32 %v428
    %vm450 = vweird.f32 %v444
    %vm451 = vmor %vm449, %vm450
    %v452 = vsel %vm451, %v444, %v448
    %v453 = vand.u32 2147483647, %v428
    %vm454 = vcmp.eq.f32.partialorder %v453, 8.507059e+37
    %v455 = vand.u32 %v428, 2147483648
    %v456 = vor.u32 1.1754944e-38, %v455
    %v457 = vsel %vm454, %v456, %v452
    %v458 = vmul.f32 1.0, %v457
    %v459 = vadd.f32 %v411, %v221
    %v461 = vrot.slane %v459, 6
    %v462 = vrot.slane %v459, 7
    %463 = vrot.lane.b32.xlu0 %v461, 64
    %v464 = vpop.permute.xlu0 %463
    %465 = vrot.lane.b32.xlu0 %v462, 64
    %v466 = vpop.permute.xlu0 %465
    %v469 = vmul.f32 %v443, %v464
    %v470 = vmul.f32 %v458, %v466
    %473 = vrot.lane.b32.xlu0 %v469, 64
    %v474 = vpop.permute.xlu0 %473
    %475 = vrot.lane.b32.xlu0 %v470, 64
    %v476 = vpop.permute.xlu0 %475
    %v479 = vadd.f32 %v135, %v474
    %v480 = vadd.f32 %v137, %v476
    %v481 = vtanh.pop %v479
    %v482 = vtanh.pop %v480
    %v483 = vsub.f32 1.0, %v443
    %v484 = vsub.f32 1.0, %v458
    %487 = vrot.lane.b32.xlu0 %v481, 96
    %v488 = vpop.permute.xlu0 %487
    %489 = vrot.lane.b32.xlu0 %v482, 96
    %v490 = vpop.permute.xlu0 %489
    %v493 = vmul.f32 %v483, %v488
    %v494 = vmul.f32 %v484, %v490
    %v497 = vrot.slane %v385, 7
    %v498 = vrot.slane %v386, 7
    %v501 = vmul.f32 %v443, %v497
    %v502 = vmul.f32 %v458, %v498
    %v503 = vadd.f32 %v493, %v501
    %v504 = vadd.f32 %v494, %v502
    %v505 = vpack.c.bf16 %v503, %v503
    %v506 = vpack.c.bf16 %v504, %v504
    %v509 = vunpack.c.l.b16 %v505
    %v510 = vunpack.c.l.b16 %v506
    %v511 = vrot.slane %v509, 2
    %v512 = vrot.slane %v510, 1
    %v513 = vsel %vm277, %v512, %v511
    %v514 = vpack.c.b16 %v513, %v513
    %515 = vrot.lane.b32.xlu0 %v514, 96
    %v516 = vpop.permute.xlu0 %515
    %v518 = vsel %vm121, %v516, 0
    %520 = vmatpush.bf16.msra.mxu0 0
    %521 = vmatpush.bf16.msra.mxu0 0
    %522 = vmatpush.bf16.msra.mxu0 0
    %523 = vmatpush.bf16.msra.mxu0 0
    %524 = vmatpush.bf16.msra.mxu0 0
    %525 = vmatpush.bf16.msra.mxu0 0
    %526 = vmatpush.bf16.msra.mxu0 %v156
    %527 = vmatpush.bf16.msra.mxu0 %v155
    %528 = vmatmul.bf16.gmra.mxu0 %v518
    %v529 = vpop.f32.mrf.mxu0
    %v530 = vadd.f32 0.0, %v529
    %v531 = vpop.f32.mrf.mxu0
    %532 = vdwg.mxu0
    %v534 = vrot.slane %v530, 5
    %v535 = vrot.slane %v530, 6
    %v538 = vadd.f32 %v135, %v534
    %v539 = vadd.f32 %v137, %v535
    %v540 = vxor.u32 %v538, 2147483648
    %v541 = vxor.u32 %v539, 2147483648
    %v542 = vmul.f32 %v540, 1.442695
    %v543 = vpow.pop %v542
    %v544 = vmul.f32 %v541, 1.442695
    %v545 = vpow.pop %v544
    %v546 = vadd.f32 %v543, 1.0
    %v547 = vadd.f32 %v545, 1.0
    %v548 = vrcp.pop %v546
    %v549 = vmul.f32 %v546, %v548
    %v550 = vsub.f32 1.0, %v549
    %v551 = vmul.f32 %v548, %v550
    %v552 = vadd.f32 %v548, %v551
    %vm553 = vweird.f32 %v546
    %vm554 = vweird.f32 %v548
    %vm555 = vmor %vm553, %vm554
    %v556 = vsel %vm555, %v548, %v552
    %v557 = vand.u32 2147483647, %v546
    %vm558 = vcmp.eq.f32.partialorder %v557, 8.507059e+37
    %v559 = vand.u32 %v546, 2147483648
    %v560 = vor.u32 1.1754944e-38, %v559
    %v561 = vsel %vm558, %v560, %v556
    %v562 = vmul.f32 1.0, %v561
    %v563 = vrcp.pop %v547
    %v564 = vmul.f32 %v547, %v563
    %v565 = vsub.f32 1.0, %v564
    %v566 = vmul.f32 %v563, %v565
    %v567 = vadd.f32 %v563, %v566
    %vm568 = vweird.f32 %v547
    %vm569 = vweird.f32 %v563
    %vm570 = vmor %vm568, %vm569
    %v571 = vsel %vm570, %v563, %v567
    %v572 = vand.u32 2147483647, %v547
    %vm573 = vcmp.eq.f32.partialorder %v572, 8.507059e+37
    %v574 = vand.u32 %v547, 2147483648
    %v575 = vor.u32 1.1754944e-38, %v574
    %v576 = vsel %vm573, %v575, %v571
    %v577 = vmul.f32 1.0, %v576
    %v578 = vadd.f32 %v530, %v221
    %v580 = vrot.slane %v578, 5
    %v581 = vrot.slane %v578, 6
    %582 = vrot.lane.b32.xlu0 %v580, 64
    %v583 = vpop.permute.xlu0 %582
    %584 = vrot.lane.b32.xlu0 %v581, 64
    %v585 = vpop.permute.xlu0 %584
    %v588 = vmul.f32 %v562, %v583
    %v589 = vmul.f32 %v577, %v585
    %592 = vrot.lane.b32.xlu0 %v588, 64
    %v593 = vpop.permute.xlu0 %592
    %594 = vrot.lane.b32.xlu0 %v589, 64
    %v595 = vpop.permute.xlu0 %594
    %v598 = vadd.f32 %v135, %v593
    %v599 = vadd.f32 %v137, %v595
    %v600 = vtanh.pop %v598
    %v601 = vtanh.pop %v599
    %v602 = vsub.f32 1.0, %v562
    %v603 = vsub.f32 1.0, %v577
    %606 = vrot.lane.b32.xlu0 %v600, 96
    %v607 = vpop.permute.xlu0 %606
    %608 = vrot.lane.b32.xlu0 %v601, 96
    %v609 = vpop.permute.xlu0 %608
    %v612 = vmul.f32 %v602, %v607
    %v613 = vmul.f32 %v603, %v609
    %v616 = vrot.slane %v503, 7
    %v617 = vrot.slane %v504, 7
    %v620 = vmul.f32 %v562, %v616
    %v621 = vmul.f32 %v577, %v617
    %v622 = vadd.f32 %v612, %v620
    %v623 = vadd.f32 %v613, %v621
    %v624 = vpack.c.bf16 %v622, %v622
    %v625 = vpack.c.bf16 %v623, %v623
    %v628 = vunpack.c.l.b16 %v624
    %v629 = vunpack.c.l.b16 %v625
    %v630 = vrot.slane %v628, 3
    %v631 = vrot.slane %v629, 2
    %v632 = vsel %vm277, %v631, %v630
    %v633 = vpack.c.b16 %v632, %v632
    %634 = vrot.lane.b32.xlu0 %v633, 96
    %v635 = vpop.permute.xlu0 %634
    %v637 = vsel %vm121, %v635, 0
    %639 = vmatpush.bf16.msra.mxu0 0
    %640 = vmatpush.bf16.msra.mxu0 0
    %641 = vmatpush.bf16.msra.mxu0 0
    %642 = vmatpush.bf16.msra.mxu0 0
    %643 = vmatpush.bf16.msra.mxu0 0
    %644 = vmatpush.bf16.msra.mxu0 0
    %645 = vmatpush.bf16.msra.mxu0 %v156
    %646 = vmatpush.bf16.msra.mxu0 %v155
    %647 = vmatmul.bf16.gmra.mxu0 %v637
    %v648 = vpop.f32.mrf.mxu0
    %v649 = vadd.f32 0.0, %v648
    %v650 = vpop.f32.mrf.mxu0
    %651 = vdwg.mxu0
    %v653 = vrot.slane %v649, 4
    %v654 = vrot.slane %v649, 5
    %v657 = vadd.f32 %v135, %v653
    %v658 = vadd.f32 %v137, %v654
    %v659 = vxor.u32 %v657, 2147483648
    %v660 = vxor.u32 %v658, 2147483648
    %v661 = vmul.f32 %v659, 1.442695
    %v662 = vpow.pop %v661
    %v663 = vmul.f32 %v660, 1.442695
    %v664 = vpow.pop %v663
    %v665 = vadd.f32 %v662, 1.0
    %v666 = vadd.f32 %v664, 1.0
    %v667 = vrcp.pop %v665
    %v668 = vmul.f32 %v665, %v667
    %v669 = vsub.f32 1.0, %v668
    %v670 = vmul.f32 %v667, %v669
    %v671 = vadd.f32 %v667, %v670
    %vm672 = vweird.f32 %v665
    %vm673 = vweird.f32 %v667
    %vm674 = vmor %vm672, %vm673
    %v675 = vsel %vm674, %v667, %v671
    %v676 = vand.u32 2147483647, %v665
    %vm677 = vcmp.eq.f32.partialorder %v676, 8.507059e+37
    %v678 = vand.u32 %v665, 2147483648
    %v679 = vor.u32 1.1754944e-38, %v678
    %v680 = vsel %vm677, %v679, %v675
    %v681 = vmul.f32 1.0, %v680
    %v682 = vrcp.pop %v666
    %v683 = vmul.f32 %v666, %v682
    %v684 = vsub.f32 1.0, %v683
    %v685 = vmul.f32 %v682, %v684
    %v686 = vadd.f32 %v682, %v685
    %vm687 = vweird.f32 %v666
    %vm688 = vweird.f32 %v682
    %vm689 = vmor %vm687, %vm688
    %v690 = vsel %vm689, %v682, %v686
    %v691 = vand.u32 2147483647, %v666
    %vm692 = vcmp.eq.f32.partialorder %v691, 8.507059e+37
    %v693 = vand.u32 %v666, 2147483648
    %v694 = vor.u32 1.1754944e-38, %v693
    %v695 = vsel %vm692, %v694, %v690
    %v696 = vmul.f32 1.0, %v695
    %v697 = vadd.f32 %v649, %v221
    %v699 = vrot.slane %v697, 4
    %v700 = vrot.slane %v697, 5
    %701 = vrot.lane.b32.xlu0 %v699, 64
    %v702 = vpop.permute.xlu0 %701
    %703 = vrot.lane.b32.xlu0 %v700, 64
    %v704 = vpop.permute.xlu0 %703
    %v707 = vmul.f32 %v681, %v702
    %v708 = vmul.f32 %v696, %v704
    %711 = vrot.lane.b32.xlu0 %v707, 64
    %v712 = vpop.permute.xlu0 %711
    %713 = vrot.lane.b32.xlu0 %v708, 64
    %v714 = vpop.permute.xlu0 %713
    %v717 = vadd.f32 %v135, %v712
    %v718 = vadd.f32 %v137, %v714
    %v719 = vtanh.pop %v717
    %v720 = vtanh.pop %v718
    %v721 = vsub.f32 1.0, %v681
    %v722 = vsub.f32 1.0, %v696
    %725 = vrot.lane.b32.xlu0 %v719, 96
    %v726 = vpop.permute.xlu0 %725
    %727 = vrot.lane.b32.xlu0 %v720, 96
    %v728 = vpop.permute.xlu0 %727
    %v731 = vmul.f32 %v721, %v726
    %v732 = vmul.f32 %v722, %v728
    %v735 = vrot.slane %v622, 7
    %v736 = vrot.slane %v623, 7
    %v739 = vmul.f32 %v681, %v735
    %v740 = vmul.f32 %v696, %v736
    %v741 = vadd.f32 %v731, %v739
    %v742 = vadd.f32 %v732, %v740
    %v743 = vpack.c.bf16 %v741, %v741
    %v744 = vpack.c.bf16 %v742, %v742
    %v747 = vunpack.c.l.b16 %v743
    %v748 = vunpack.c.l.b16 %v744
    %v749 = vrot.slane %v747, 4
    %v750 = vrot.slane %v748, 3
    %v751 = vsel %vm277, %v750, %v749
    %v752 = vpack.c.b16 %v751, %v751
    %753 = vrot.lane.b32.xlu0 %v752, 96
    %v754 = vpop.permute.xlu0 %753
    %v756 = vsel %vm121, %v754, 0
    %758 = vmatpush.bf16.msra.mxu0 0
    %759 = vmatpush.bf16.msra.mxu0 0
    %760 = vmatpush.bf16.msra.mxu0 0
    %761 = vmatpush.bf16.msra.mxu0 0
    %762 = vmatpush.bf16.msra.mxu0 0
    %763 = vmatpush.bf16.msra.mxu0 0
    %764 = vmatpush.bf16.msra.mxu0 %v156
    %765 = vmatpush.bf16.msra.mxu0 %v155
    %766 = vmatmul.bf16.gmra.mxu0 %v756
    %v767 = vpop.f32.mrf.mxu0
    %v768 = vadd.f32 0.0, %v767
    %v769 = vpop.f32.mrf.mxu0
    %770 = vdwg.mxu0
    %v772 = vrot.slane %v768, 3
    %v773 = vrot.slane %v768, 4
    %v776 = vadd.f32 %v135, %v772
    %v777 = vadd.f32 %v137, %v773
    %v778 = vxor.u32 %v776, 2147483648
    %v779 = vxor.u32 %v777, 2147483648
    %v780 = vmul.f32 %v778, 1.442695
    %v781 = vpow.pop %v780
    %v782 = vmul.f32 %v779, 1.442695
    %v783 = vpow.pop %v782
    %v784 = vadd.f32 %v781, 1.0
    %v785 = vadd.f32 %v783, 1.0
    %v786 = vrcp.pop %v784
    %v787 = vmul.f32 %v784, %v786
    %v788 = vsub.f32 1.0, %v787
    %v789 = vmul.f32 %v786, %v788
    %v790 = vadd.f32 %v786, %v789
    %vm791 = vweird.f32 %v784
    %vm792 = vweird.f32 %v786
    %vm793 = vmor %vm791, %vm792
    %v794 = vsel %vm793, %v786, %v790
    %v795 = vand.u32 2147483647, %v784
    %vm796 = vcmp.eq.f32.partialorder %v795, 8.507059e+37
    %v797 = vand.u32 %v784, 2147483648
    %v798 = vor.u32 1.1754944e-38, %v797
    %v799 = vsel %vm796, %v798, %v794
    %v800 = vmul.f32 1.0, %v799
    %v801 = vrcp.pop %v785
    %v802 = vmul.f32 %v785, %v801
    %v803 = vsub.f32 1.0, %v802
    %v804 = vmul.f32 %v801, %v803
    %v805 = vadd.f32 %v801, %v804
    %vm806 = vweird.f32 %v785
    %vm807 = vweird.f32 %v801
    %vm808 = vmor %vm806, %vm807
    %v809 = vsel %vm808, %v801, %v805
    %v810 = vand.u32 2147483647, %v785
    %vm811 = vcmp.eq.f32.partialorder %v810, 8.507059e+37
    %v812 = vand.u32 %v785, 2147483648
    %v813 = vor.u32 1.1754944e-38, %v812
    %v814 = vsel %vm811, %v813, %v809
    %v815 = vmul.f32 1.0, %v814
    %v816 = vadd.f32 %v768, %v221
    %v818 = vrot.slane %v816, 3
    %v819 = vrot.slane %v816, 4
    %820 = vrot.lane.b32.xlu0 %v818, 64
    %v821 = vpop.permute.xlu0 %820
    %822 = vrot.lane.b32.xlu0 %v819, 64
    %v823 = vpop.permute.xlu0 %822
    %v826 = vmul.f32 %v800, %v821
    %v827 = vmul.f32 %v815, %v823
    %830 = vrot.lane.b32.xlu0 %v826, 64
    %v831 = vpop.permute.xlu0 %830
    %832 = vrot.lane.b32.xlu0 %v827, 64
    %v833 = vpop.permute.xlu0 %832
    %v836 = vadd.f32 %v135, %v831
    %v837 = vadd.f32 %v137, %v833
    %v838 = vtanh.pop %v836
    %v839 = vtanh.pop %v837
    %v840 = vsub.f32 1.0, %v800
    %v841 = vsub.f32 1.0, %v815
    %844 = vrot.lane.b32.xlu0 %v838, 96
    %v845 = vpop.permute.xlu0 %844
    %846 = vrot.lane.b32.xlu0 %v839, 96
    %v847 = vpop.permute.xlu0 %846
    %v850 = vmul.f32 %v840, %v845
    %v851 = vmul.f32 %v841, %v847
    %v854 = vrot.slane %v741, 7
    %v855 = vrot.slane %v742, 7
    %v858 = vmul.f32 %v800, %v854
    %v859 = vmul.f32 %v815, %v855
    %v860 = vadd.f32 %v850, %v858
    %v861 = vadd.f32 %v851, %v859
    %v862 = vpack.c.bf16 %v860, %v860
    %v863 = vpack.c.bf16 %v861, %v861
    %v866 = vunpack.c.l.b16 %v862
    %v867 = vunpack.c.l.b16 %v863
    %v868 = vrot.slane %v866, 5
    %v869 = vrot.slane %v867, 4
    %v870 = vsel %vm277, %v869, %v868
    %v871 = vpack.c.b16 %v870, %v870
    %872 = vrot.lane.b32.xlu0 %v871, 96
    %v873 = vpop.permute.xlu0 %872
    %v875 = vsel %vm121, %v873, 0
    %877 = vmatpush.bf16.msra.mxu0 0
    %878 = vmatpush.bf16.msra.mxu0 0
    %879 = vmatpush.bf16.msra.mxu0 0
    %880 = vmatpush.bf16.msra.mxu0 0
    %881 = vmatpush.bf16.msra.mxu0 0
    %882 = vmatpush.bf16.msra.mxu0 0
    %883 = vmatpush.bf16.msra.mxu0 %v156
    %884 = vmatpush.bf16.msra.mxu0 %v155
    %885 = vmatmul.bf16.gmra.mxu0 %v875
    %v886 = vpop.f32.mrf.mxu0
    %v887 = vadd.f32 0.0, %v886
    %v888 = vpop.f32.mrf.mxu0
    %889 = vdwg.mxu0
    %v891 = vrot.slane %v887, 2
    %v892 = vrot.slane %v887, 3
    %v895 = vadd.f32 %v135, %v891
    %v896 = vadd.f32 %v137, %v892
    %v897 = vxor.u32 %v895, 2147483648
    %v898 = vxor.u32 %v896, 2147483648
    %v899 = vmul.f32 %v897, 1.442695
    %v900 = vpow.pop %v899
    %v901 = vmul.f32 %v898, 1.442695
    %v902 = vpow.pop %v901
    %v903 = vadd.f32 %v900, 1.0
    %v904 = vadd.f32 %v902, 1.0
    %v905 = vrcp.pop %v903
    %v906 = vmul.f32 %v903, %v905
    %v907 = vsub.f32 1.0, %v906
    %v908 = vmul.f32 %v905, %v907
    %v909 = vadd.f32 %v905, %v908
    %vm910 = vweird.f32 %v903
    %vm911 = vweird.f32 %v905
    %vm912 = vmor %vm910, %vm911
    %v913 = vsel %vm912, %v905, %v909
    %v914 = vand.u32 2147483647, %v903
    %vm915 = vcmp.eq.f32.partialorder %v914, 8.507059e+37
    %v916 = vand.u32 %v903, 2147483648
    %v917 = vor.u32 1.1754944e-38, %v916
    %v918 = vsel %vm915, %v917, %v913
    %v919 = vmul.f32 1.0, %v918
    %v920 = vrcp.pop %v904
    %v921 = vmul.f32 %v904, %v920
    %v922 = vsub.f32 1.0, %v921
    %v923 = vmul.f32 %v920, %v922
    %v924 = vadd.f32 %v920, %v923
    %vm925 = vweird.f32 %v904
    %vm926 = vweird.f32 %v920
    %vm927 = vmor %vm925, %vm926
    %v928 = vsel %vm927, %v920, %v924
    %v929 = vand.u32 2147483647, %v904
    %vm930 = vcmp.eq.f32.partialorder %v929, 8.507059e+37
    %v931 = vand.u32 %v904, 2147483648
    %v932 = vor.u32 1.1754944e-38, %v931
    %v933 = vsel %vm930, %v932, %v928
    %v934 = vmul.f32 1.0, %v933
    %v935 = vadd.f32 %v887, %v221
    %v937 = vrot.slane %v935, 2
    %v938 = vrot.slane %v935, 3
    %939 = vrot.lane.b32.xlu0 %v937, 64
    %v940 = vpop.permute.xlu0 %939
    %941 = vrot.lane.b32.xlu0 %v938, 64
    %v942 = vpop.permute.xlu0 %941
    %v945 = vmul.f32 %v919, %v940
    %v946 = vmul.f32 %v934, %v942
    %949 = vrot.lane.b32.xlu0 %v945, 64
    %v950 = vpop.permute.xlu0 %949
    %951 = vrot.lane.b32.xlu0 %v946, 64
    %v952 = vpop.permute.xlu0 %951
    %v955 = vadd.f32 %v135, %v950
    %v956 = vadd.f32 %v137, %v952
    %v957 = vtanh.pop %v955
    %v958 = vtanh.pop %v956
    %v959 = vsub.f32 1.0, %v919
    %v960 = vsub.f32 1.0, %v934
    %963 = vrot.lane.b32.xlu0 %v957, 96
    %v964 = vpop.permute.xlu0 %963
    %965 = vrot.lane.b32.xlu0 %v958, 96
    %v966 = vpop.permute.xlu0 %965
    %v969 = vmul.f32 %v959, %v964
    %v970 = vmul.f32 %v960, %v966
    %v973 = vrot.slane %v860, 7
    %v974 = vrot.slane %v861, 7
    %v977 = vmul.f32 %v919, %v973
    %v978 = vmul.f32 %v934, %v974
    %v979 = vadd.f32 %v969, %v977
    %v980 = vadd.f32 %v970, %v978
    %v981 = vpack.c.bf16 %v979, %v979
    %v982 = vpack.c.bf16 %v980, %v980
    %v985 = vunpack.c.l.b16 %v981
    %v986 = vunpack.c.l.b16 %v982
    %v987 = vrot.slane %v985, 6
    %v988 = vrot.slane %v986, 5
    %v989 = vsel %vm277, %v988, %v987
    %v990 = vpack.c.b16 %v989, %v989
    %991 = vrot.lane.b32.xlu0 %v990, 96
    %v992 = vpop.permute.xlu0 %991
    %v994 = vsel %vm121, %v992, 0
    %996 = vmatpush.bf16.msra.mxu0 0
    %997 = vmatpush.bf16.msra.mxu0 0
    %998 = vmatpush.bf16.msra.mxu0 0
    %999 = vmatpush.bf16.msra.mxu0 0
    %1000 = vmatpush.bf16.msra.mxu0 0
    %1001 = vmatpush.bf16.msra.mxu0 0
    %1002 = vmatpush.bf16.msra.mxu0 %v156
    %1003 = vmatpush.bf16.msra.mxu0 %v155
    %1004 = vmatmul.bf16.gmra.mxu0 %v994
    %v1005 = vpop.f32.mrf.mxu0
    %v1006 = vadd.f32 0.0, %v1005
    %v1007 = vpop.f32.mrf.mxu0
    %1008 = vdwg.mxu0
    %v1010 = vrot.slane %v1006, 1
    %v1011 = vrot.slane %v1006, 2
    %v1014 = vadd.f32 %v135, %v1010
    %v1015 = vadd.f32 %v137, %v1011
    %v1016 = vxor.u32 %v1014, 2147483648
    %v1017 = vxor.u32 %v1015, 2147483648
    %v1018 = vmul.f32 %v1016, 1.442695
    %v1019 = vpow.pop %v1018
    %v1020 = vmul.f32 %v1017, 1.442695
    %v1021 = vpow.pop %v1020
    %v1022 = vadd.f32 %v1019, 1.0
    %v1023 = vadd.f32 %v1021, 1.0
    %v1024 = vrcp.pop %v1022
    %v1025 = vmul.f32 %v1022, %v1024
    %v1026 = vsub.f32 1.0, %v1025
    %v1027 = vmul.f32 %v1024, %v1026
    %v1028 = vadd.f32 %v1024, %v1027
    %vm1029 = vweird.f32 %v1022
    %vm1030 = vweird.f32 %v1024
    %vm1031 = vmor %vm1029, %vm1030
    %v1032 = vsel %vm1031, %v1024, %v1028
    %v1033 = vand.u32 2147483647, %v1022
    %vm1034 = vcmp.eq.f32.partialorder %v1033, 8.507059e+37
    %v1035 = vand.u32 %v1022, 2147483648
    %v1036 = vor.u32 1.1754944e-38, %v1035
    %v1037 = vsel %vm1034, %v1036, %v1032
    %v1038 = vmul.f32 1.0, %v1037
    %v1039 = vrcp.pop %v1023
    %v1040 = vmul.f32 %v1023, %v1039
    %v1041 = vsub.f32 1.0, %v1040
    %v1042 = vmul.f32 %v1039, %v1041
    %v1043 = vadd.f32 %v1039, %v1042
    %vm1044 = vweird.f32 %v1023
    %vm1045 = vweird.f32 %v1039
    %vm1046 = vmor %vm1044, %vm1045
    %v1047 = vsel %vm1046, %v1039, %v1043
    %v1048 = vand.u32 2147483647, %v1023
    %vm1049 = vcmp.eq.f32.partialorder %v1048, 8.507059e+37
    %v1050 = vand.u32 %v1023, 2147483648
    %v1051 = vor.u32 1.1754944e-38, %v1050
    %v1052 = vsel %vm1049, %v1051, %v1047
    %v1053 = vmul.f32 1.0, %v1052
    %v1054 = vadd.f32 %v1006, %v221
    %v1056 = vrot.slane %v1054, 1
    %v1057 = vrot.slane %v1054, 2
    %1058 = vrot.lane.b32.xlu0 %v1056, 64
    %v1059 = vpop.permute.xlu0 %1058
    %1060 = vrot.lane.b32.xlu0 %v1057, 64
    %v1061 = vpop.permute.xlu0 %1060
    %v1064 = vmul.f32 %v1038, %v1059
    %v1065 = vmul.f32 %v1053, %v1061
    %1068 = vrot.lane.b32.xlu0 %v1064, 64
    %v1069 = vpop.permute.xlu0 %1068
    %1070 = vrot.lane.b32.xlu0 %v1065, 64
    %v1071 = vpop.permute.xlu0 %1070
    %v1074 = vadd.f32 %v135, %v1069
    %v1075 = vadd.f32 %v137, %v1071
    %v1076 = vtanh.pop %v1074
    %v1077 = vtanh.pop %v1075
    %v1078 = vsub.f32 1.0, %v1038
    %v1079 = vsub.f32 1.0, %v1053
    %1082 = vrot.lane.b32.xlu0 %v1076, 96
    %v1083 = vpop.permute.xlu0 %1082
    %1084 = vrot.lane.b32.xlu0 %v1077, 96
    %v1085 = vpop.permute.xlu0 %1084
    %v1088 = vmul.f32 %v1078, %v1083
    %v1089 = vmul.f32 %v1079, %v1085
    %v1092 = vrot.slane %v979, 7
    %v1093 = vrot.slane %v980, 7
    %v1096 = vmul.f32 %v1038, %v1092
    %v1097 = vmul.f32 %v1053, %v1093
    %v1098 = vadd.f32 %v1088, %v1096
    %v1099 = vadd.f32 %v1089, %v1097
    %v1102 = vrot.slane %v1099, 7
    %1103 = vrot.lane.b32.xlu0 %v1098, 96
    %v1104 = vpop.permute.xlu0 %1103
    %1105 = vrot.lane.b32.xlu0 %v1102, 96
    %v1106 = vpop.permute.xlu0 %1105
    %vm1109 = vcmask 261127
    %1110 = vst.msk [vmem:[#allocation2 - $0x7] sm:$0x80] %vm1109, %v1104
    %vm1111 = vcmask 253952
    %1112 = vst.msk [vmem:[#allocation2 + $0x1] sm:$0x1] %vm1111, %v1106
    // Predicated region
    $region46: #{tpu_custom_call.1} parent=1 // pred_check
      %p1113 = pneg %p94
    $region47: #{tpu_custom_call.1} parent=1 // pred_check_branch
      %1115 = sbr.rel (%p1113) target = $region49
    $region48: #{tpu_custom_call.1} parent=1 // pred_region
      %v1116 = vld [vmem:[#allocation6] sm:$0x3]
      %v1117 = vld [vmem:[#allocation8] sm:$0x3]
      %v1119 = vrot.slane %v1117, 1
      %v1120 = vrot.slane %v1117, 2
      %1121 = vrot.lane.b32.xlu0 %v1119, 32
      %v1122 = vpop.permute.xlu0 %1121
      %1123 = vrot.lane.b32.xlu0 %v1120, 32
      %v1124 = vpop.permute.xlu0 %1123
      %v1127 = vadd.f32 %v1098, %v1122
      %v1128 = vadd.f32 %v1099, %v1124
      %v1131 = vrot.slane %v1127, 7
      %v1132 = vrot.slane %v1128, 6
      %v1133 = vsel %vm277, %v1132, %v1131
      %v1135 = vsel %vm121, %v1116, %v1133
      %v1136 = vpack.c.bf16 %v1135, %v1135
      %v1137 = vld [vmem:[#allocation9 + $0x20] sm:$0xf]
      %v1138 = vld [vmem:[#allocation9 + $0x24] sm:$0xf]
      %v1139 = vld [vmem:[#allocation9 + $0x28] sm:$0xf]
      %v1140 = vld [vmem:[#allocation9 + $0x2c] sm:$0xf]
      %v1141 = vld [vmem:[#allocation9 + $0x30] sm:$0xf]
      %v1142 = vld [vmem:[#allocation9 + $0x34] sm:$0xf]
      %v1143 = vld [vmem:[#allocation9 + $0x38] sm:$0xf]
      %v1144 = vld [vmem:[#allocation9 + $0x3c] sm:$0xf]
      %v1153 = vunpack.c.l.b16 %v1137
      %v1154 = vunpack.c.l.b16 %v1138
      %v1155 = vunpack.c.l.b16 %v1139
      %v1156 = vunpack.c.l.b16 %v1140
      %v1157 = vunpack.c.l.b16 %v1141
      %v1158 = vunpack.c.l.b16 %v1142
      %v1159 = vunpack.c.l.b16 %v1143
      %v1160 = vunpack.c.l.b16 %v1144
      %v1161 = vpack.c.b16 %v1154, %v1153
      %v1162 = vpack.c.b16 %v1156, %v1155
      %v1163 = vpack.c.b16 %v1158, %v1157
      %v1164 = vpack.c.b16 %v1160, %v1159
      %vm1169 = vcmask 523264
      %v1171 = vsel %vm1169, %v1136, 0
      %1173 = vmatpush.bf16.msra.mxu0 0
      %1174 = vmatpush.bf16.msra.mxu0 0
      %1175 = vmatpush.bf16.msra.mxu0 0
      %1176 = vmatpush.bf16.msra.mxu0 0
      %1177 = vmatpush.bf16.msra.mxu0 %v1164
      %1178 = vmatpush.bf16.msra.mxu0 %v1163
      %1179 = vmatpush.bf16.msra.mxu0 %v1162
      %1180 = vmatpush.bf16.msra.mxu0 %v1161
      %1181 = vmatmul.bf16.gmra.mxu0 %v1171
      %v1182 = vpop.f32.mrf.mxu0
      %v1183 = vadd.f32 0.0, %v1182
      %v1184 = vpop.f32.mrf.mxu0
      %1185 = vdwg.mxu0
      %v1186 = vld [vmem:[#allocation11 + $0x2] sm:$0x1]
      %v1187 = vperm.slane %v1186, 0
      %v1188 = vadd.f32 %v1183, %v1187
      %vm1189 = vcmask 254976
      %1190 = vst.msk [vmem:[#allocation12] sm:$0x3] %vm1189, %v1188
    $region49: #{tpu_custom_call.1} parent=1 // pred_fallthru
      _
    // Predicated region
    $region50: #{tpu_custom_call.1} parent=1 // pred_check
      _
    $region51: #{tpu_custom_call.1} parent=1 // pred_check_branch
      %1192 = sbr.rel (0) target = $region53
    $region52: #{tpu_custom_call.1} parent=1 // pred_region
      %1194 = vsyncadd [#allocation5], 0
      %s1196 = sshll.u32 [#allocation12], 4
      %s1197 = int_to_ptr.vmem [resolvable:$true] %s1196
      %s1198 = sshll.u32 %s5, 4
      %s1199 = int_to_ptr.hbm [resolvable:$true] %s1198
      %1201 = dma.vmem_to_hbm [thread:$0]  %s1197, 32, %s1199, [#allocation5]
    $region53: #{tpu_custom_call.1} parent=1 // pred_fallthru
      _
    // Predicated region
    $region54: #{tpu_custom_call.1} parent=1 // pred_check
      _
    $region55: #{tpu_custom_call.1} parent=1 // pred_check_branch
      %1203 = sbr.rel (0) target = $region57
    $region56: #{tpu_custom_call.1} parent=1 // pred_region
      %1205 = dma.done [#allocation5], 32
    $region57: #{tpu_custom_call.1} parent=1 // pred_fallthru
      _
    %1206 = vsyncpa [#allocation4], 1
    %1207 = vsyncpa [#allocation7], 1
    %1208 = vsyncpa [#allocation10], 1
    %1209 = vsyncpa [#allocation5], 1

</llo_original>
